<compile_context>
chip_gen: v6e
topology: v6e:2x2x1
jax: 0.10.0
libtpu: 0.0.40
codegen_flags: <defaults>
</compile_context>

<pallas_src>
import jax
import jax.numpy as jnp
from jax.experimental import pallas as pl
from jax.experimental.pallas import tpu as pltpu


# ----------------------------- small helpers --------------------------------

def _round_up(x, m):
    return ((x + m - 1) // m) * m


def _cdiv(a, b):
    return -(-a // b)


def _default_vmem_limit_bytes():
    """Explicit scoped-VMEM limit: ~3/4 of physical, capped at 96 MiB.
    Falls back to a v7x-sized (64 MiB) assumption if the query is unavailable."""
    try:
        phys = int(pltpu.get_tpu_info().vmem_capacity_bytes)
    except Exception:
        phys = 64 << 20
    return int(min(phys * 3 // 4, 96 << 20))


def _choose_tb(batch, n_pad, d_pad, vmem_limit_bytes):
    """Largest batch tile (multiple of 8) that fits the VMEM budget, targeting
    ~1K MXU rows per step, while keeping >= 2 grid steps when the batch allows
    it (so the 'parallel' batch axis can be split across v7x's 2 TensorCores)."""
    # f32 footprint per query: double-buffered input tile + double-buffered
    # output row + ~6 live (n_pad, d_pad) f32 intermediates (h1, logits, e, ...).
    bytes_per_q = 4 * (2 * n_pad * d_pad + 2 * d_pad + 6 * n_pad * d_pad)
    budget = int(vmem_limit_bytes * 0.6)          # headroom: weights + compiler scratch
    cap = max(8, (budget // bytes_per_q) // 8 * 8)
    target = max(8, _round_up(_cdiv(1024, n_pad), 8))   # ~1K MXU rows / step
    tb = min(cap, target)
    b_pad8 = _round_up(max(batch, 1), 8)
    if b_pad8 >= 16:                               # keep >= 2 grid steps (v7x megacore)
        tb = min(tb, _round_up(_cdiv(b_pad8, 2), 8))
    return int(min(tb, b_pad8))


# ------------------------------- the kernel ---------------------------------

def _make_kernel(n_valid, mxu_dtype):
    cast_for_mxu = jnp.dtype(mxu_dtype) != jnp.dtype(jnp.float32)

    def kernel(emb_ref, w1t_ref, b1_ref, w2t_ref, b2_ref, out_ref):
        tb, n, d = emb_ref.shape
        emb = emb_ref[...]                             # (tb, n, d) f32
        emb2d = emb.reshape(tb * n, d)                 # layout-free: n % 8 == 0

        x = emb2d.astype(mxu_dtype) if cast_for_mxu else emb2d
        h1 = jnp.dot(x, w1t_ref[...], preferred_element_type=jnp.float32)
        h1 = jnp.maximum(h1 + b1_ref[...], 0.0)        # (tb*n, d) f32

        h = h1.astype(mxu_dtype) if cast_for_mxu else h1
        logits = jnp.dot(h, w2t_ref[...], preferred_element_type=jnp.float32)
        logits = (logits + b2_ref[...]).reshape(tb, n, d)

        if n_valid < n:
            # Mask zero-padded conjunct rows out of the softmax.
            row = jax.lax.broadcasted_iota(jnp.int32, (tb, n, d), 1)
            logits = jnp.where(row < n_valid, logits, -1e30)

        # Softmax over the N conjuncts (axis=1); divide folded into the reduction.
        m = jnp.max(logits, axis=1, keepdims=True)     # (tb, 1, d)
        e = jnp.exp(logits - m)                        # (tb, n, d)
        denom = jnp.sum(e, axis=1)                     # (tb, d)  (>= 1)
        num = jnp.sum(e * emb, axis=1)                 # (tb, d)

        inv = pl.reciprocal(denom, approx=True)        # EUP vrcp slot
        inv = inv * (2.0 - denom * inv)                # one Newton step -> ~f32 exact
        out_ref[...] = num * inv                       # lane/sublane-dense store

    return kernel


# ------------------------------ params + wrapper -----------------------------

def make_params(w1, b1, w2, b2, *, lane_multiple=128, mxu_dtype=jnp.float32):
    """Done ONCE at parameter-load time: transpose PyTorch (out, in) weights to
    (in, out), zero-pad D to a lane-dense multiple, and optionally store the
    matmul weights in bf16 (v6e/v7x MXU path)."""
    d = int(b1.shape[0])
    d_pad = _round_up(d, lane_multiple) if lane_multiple else d

    def pad_w(w):
        wt = jnp.transpose(jnp.asarray(w, jnp.float32))            # (in, out)
        wt = jnp.pad(wt, ((0, d_pad - d), (0, d_pad - d)))
        return wt.astype(mxu_dtype)

    def pad_b(b):
        b = jnp.asarray(b, jnp.float32).reshape(1, d)
        return jnp.pad(b, ((0, 0), (0, d_pad - d)))                 # biases stay f32

    return {"w1t": pad_w(w1), "b1": pad_b(b1), "w2t": pad_w(w2), "b2": pad_b(b2),
            "d": d, "d_pad": d_pad, "mxu_dtype": mxu_dtype}


def center_intersection_batched(embeddings, params, *, tb=None, vmem_limit_bytes=None):
    """embeddings: (B, N, D) -> (B, D). B independent intersection problems."""
    B, N, D = embeddings.shape
    assert D == params["d"], "embedding dim must match the Linear layers"
    d_pad = params["d_pad"]
    n_pad = _round_up(max(N, 1), 8)                    # sublane-aligned conjunct axis

    if vmem_limit_bytes is None:
        vmem_limit_bytes = _default_vmem_limit_bytes()
    if tb is None:
        tb = _choose_tb(B, n_pad, d_pad, vmem_limit_bytes)
    tb = max(8, _round_up(int(tb), 8))
    b_pad = _round_up(B, tb)
    grid = (b_pad // tb,)

    # Layout plumbing (zero-pad B / N / D) happens once per call in the wrapper.
    emb = embeddings.astype(jnp.float32)
    if (b_pad, n_pad, d_pad) != (B, N, D):
        emb = jnp.pad(emb, ((0, b_pad - B), (0, n_pad - N), (0, d_pad - D)))

    w_itemsize = jnp.dtype(params["mxu_dtype"]).itemsize
    cost = pl.CostEstimate(
        flops=4 * b_pad * n_pad * d_pad * d_pad + 8 * b_pad * n_pad * d_pad,
        transcendentals=b_pad * n_pad * d_pad + b_pad * d_pad,
        bytes_accessed=4 * (b_pad * n_pad * d_pad + b_pad * d_pad + 2 * d_pad)
                       + w_itemsize * 2 * d_pad * d_pad,
    )

    kernel = _make_kernel(N, params["mxu_dtype"])

    def resident_spec(shape, pipeline_mode):
        idx = lambda b: (0,) * len(shape)              # constant -> stays in VMEM
        if pipeline_mode is None:
            return pl.BlockSpec(shape, idx)
        return pl.BlockSpec(shape, idx, pipeline_mode=pipeline_mode)

    def run(weight_pipeline_mode):
        return pl.pallas_call(
            kernel,
            out_shape=jax.ShapeDtypeStruct((b_pad, d_pad), jnp.float32),
            grid_spec=pltpu.PrefetchScalarGridSpec(
                num_scalar_prefetch=0,
                grid=grid,
                in_specs=[
                    pl.BlockSpec((tb, n_pad, d_pad), lambda b: (b, 0, 0)),
                    resident_spec((d_pad, d_pad), weight_pipeline_mode),   # w1t
                    resident_spec((1, d_pad), weight_pipeline_mode),       # b1
                    resident_spec((d_pad, d_pad), weight_pipeline_mode),   # w2t
                    resident_spec((1, d_pad), weight_pipeline_mode),       # b2
                ],
                out_specs=pl.BlockSpec((tb, d_pad), lambda b: (b, 0)),
            ),
            compiler_params=pltpu.CompilerParams(
                dimension_semantics=("parallel",),     # batch axis -> both v7x TCs
                vmem_limit_bytes=int(vmem_limit_bytes),
            ),
            cost_estimate=cost,
        )(emb, params["w1t"], params["b1"], params["w2t"], params["b2"])

    try:
        # Invariant weights: single-buffered (index_map is constant, so a second
        # buffer buys nothing and just wastes VMEM -- matters at production D).
        out = run(pl.Buffered(1))
    except Exception:
        out = run(None)                                # fallback: default buffering

    return out[:B, :D]


def center_intersection(embeddings, params):
    """Single-query path matching the PyTorch forward: (N, D) -> (D,).
    (Prefer batching queries upstream for hot loops.)"""
    return center_intersection_batched(embeddings[None], params)[0]


# ------------------------------- reference ----------------------------------

def _reference_batched(embeddings, w1, b1, w2, b2):
    h1 = jax.nn.relu(jnp.einsum("bnd,ed->bne", embeddings, w1) + b1)
    att = jax.nn.softmax(jnp.einsum("bnd,ed->bne", h1, w2) + b2, axis=1)
    return jnp.sum(att * embeddings, axis=1)


# --------------------------------- main --------------------------------------

if __name__ == "__main__":
    # D = hidden dim; N conjunct embeddings per intersection (deliberately not a
    # multiple of 8 to exercise the padding/masking path); B batched queries.
    B, N, D = 16, 5, 32
    key = jax.random.PRNGKey(0)
    k_emb, k_w1, k_b1, k_w2, k_b2 = jax.random.split(key, 5)

    embeddings = jax.random.normal(k_emb, (B, N, D), dtype=jnp.float32)

    # nn.Linear(D, D): weight (out, in) xavier_uniform, bias uniform(-1/sqrt(D), 1/sqrt(D)).
    xav_bound = (6.0 / (D + D)) ** 0.5
    bias_bound = 1.0 / (D ** 0.5)
    w1 = jax.random.uniform(k_w1, (D, D), jnp.float32, -xav_bound, xav_bound)
    b1 = jax.random.uniform(k_b1, (D,), jnp.float32, -bias_bound, bias_bound)
    w2 = jax.random.uniform(k_w2, (D, D), jnp.float32, -xav_bound, xav_bound)
    b2 = jax.random.uniform(k_b2, (D,), jnp.float32, -bias_bound, bias_bound)

    ref_b = _reference_batched(embeddings, w1, b1, w2, b2)

    # --- f32 MXU path (default; required on v5e) -----------------------------
    params = make_params(w1, b1, w2, b2)               # transposes/pads done once
    out_b = jax.block_until_ready(center_intersection_batched(embeddings, params))
    assert out_b.shape == (B, D)
    assert jnp.allclose(out_b, ref_b, atol=1e-4, rtol=1e-4), "batched mismatch vs reference"

    # Single-query path (exactly the PyTorch module's forward signature).
    out_s = jax.block_until_ready(center_intersection(embeddings[0], params))
    assert out_s.shape == (D,)
    assert jnp.allclose(out_s, ref_b[0], atol=1e-4, rtol=1e-4), "single-query mismatch vs reference"

    # --- bf16 MXU-input path (v6e/v7x option) --------------------------------
    # Weights stored bf16, activations cast to bf16 only at the two matmuls,
    # f32 accumulation + f32 softmax; validated at a bf16-appropriate tolerance.
    params_bf16 = make_params(w1, b1, w2, b2, mxu_dtype=jnp.bfloat16)
    out_bf16 = jax.block_until_ready(center_intersection_batched(embeddings, params_bf16))
    assert out_bf16.shape == (B, D)
    assert jnp.allclose(out_bf16, ref_b, atol=1e-1, rtol=1e-1), "bf16 path mismatch vs reference"

    print("KERNEL_OK")
</pallas_src>

<mosaic_0001>
module attributes {stable_mosaic.version = 11 : i64} {
  func.func @kernel(%arg0: i32, %arg1: memref<8x8x128xf32, #tpu.memory_space<vmem>>, %arg2: memref<128x128xf32, #tpu.memory_space<vmem>>, %arg3: memref<1x128xf32, #tpu.memory_space<vmem>>, %arg4: memref<128x128xf32, #tpu.memory_space<vmem>>, %arg5: memref<1x128xf32, #tpu.memory_space<vmem>>, %arg6: memref<8x128xf32, #tpu.memory_space<vmem>>) attributes {dimension_semantics = [#tpu.dimension_semantics<parallel>], iteration_bounds = array<i64: 2>, scalar_prefetch = 0 : i64, scratch_operands = 0 : i64, tpu.core_type = #tpu.core_type<tc>, window_params = [{transform_indices = @transform_0, window_bounds = array<i64: 8, 8, 128>}, {pipeline_mode = #tpu.pipeline_mode<synchronous>, transform_indices = @transform_1, window_bounds = array<i64: 128, 128>}, {pipeline_mode = #tpu.pipeline_mode<synchronous>, transform_indices = @transform_2, window_bounds = array<i64: 1, 128>}, {pipeline_mode = #tpu.pipeline_mode<synchronous>, transform_indices = @transform_3, window_bounds = array<i64: 128, 128>}, {pipeline_mode = #tpu.pipeline_mode<synchronous>, transform_indices = @transform_4, window_bounds = array<i64: 1, 128>}, {transform_indices = @transform_5, window_bounds = array<i64: 8, 128>}]} {
    %c0 = arith.constant 0 : index
    %c0_0 = arith.constant 0 : index
    %c0_1 = arith.constant 0 : index
    %0 = vector.load %arg1[%c0, %c0_0, %c0_1] : memref<8x8x128xf32, #tpu.memory_space<vmem>>, vector<8x8x128xf32>
    %1 = vector.shape_cast %0 : vector<8x8x128xf32> to vector<64x128xf32>
    %c0_2 = arith.constant 0 : index
    %c0_3 = arith.constant 0 : index
    %2 = vector.load %arg2[%c0_2, %c0_3] : memref<128x128xf32, #tpu.memory_space<vmem>>, vector<128x128xf32>
    %cst = arith.constant dense<0.000000e+00> : vector<64x128xf32>
    %3 = tpu.matmul %1, %2, %cst {dimension_numbers = #tpu.dot_dimension_numbers<[1], [0], [0], [1], [0, 0, 1, 1], [], []>} : vector<64x128xf32>, vector<128x128xf32>, vector<64x128xf32> -> vector<64x128xf32>
    %c0_4 = arith.constant 0 : index
    %c0_5 = arith.constant 0 : index
    %4 = vector.load %arg3[%c0_4, %c0_5] : memref<1x128xf32, #tpu.memory_space<vmem>>, vector<1x128xf32>
    %5 = vector.broadcast %4 : vector<1x128xf32> to vector<64x128xf32>
    %6 = arith.addf %3, %5 : vector<64x128xf32>
    %cst_6 = arith.constant 0.000000e+00 : f32
    %7 = vector.broadcast %cst_6 : f32 to vector<64x128xf32>
    %8 = arith.maximumf %6, %7 : vector<64x128xf32>
    %c0_7 = arith.constant 0 : index
    %c0_8 = arith.constant 0 : index
    %9 = vector.load %arg4[%c0_7, %c0_8] : memref<128x128xf32, #tpu.memory_space<vmem>>, vector<128x128xf32>
    %cst_9 = arith.constant dense<0.000000e+00> : vector<64x128xf32>
    %10 = tpu.matmul %8, %9, %cst_9 {dimension_numbers = #tpu.dot_dimension_numbers<[1], [0], [0], [1], [0, 0, 1, 1], [], []>} : vector<64x128xf32>, vector<128x128xf32>, vector<64x128xf32> -> vector<64x128xf32>
    %c0_10 = arith.constant 0 : index
    %c0_11 = arith.constant 0 : index
    %11 = vector.load %arg5[%c0_10, %c0_11] : memref<1x128xf32, #tpu.memory_space<vmem>>, vector<1x128xf32>
    %12 = vector.broadcast %11 : vector<1x128xf32> to vector<64x128xf32>
    %13 = arith.addf %10, %12 : vector<64x128xf32>
    %14 = vector.shape_cast %13 : vector<64x128xf32> to vector<8x8x128xf32>
    %15 = tpu.iota {dimensions = array<i32: 1>} : vector<8x8x128xi32>
    %c5_i32 = arith.constant 5 : i32
    %16 = vector.broadcast %c5_i32 : i32 to vector<8x8x128xi32>
    %17 = arith.cmpi slt, %15, %16 : vector<8x8x128xi32>
    %cst_12 = arith.constant -1.000000e+30 : f32
    %18 = vector.broadcast %cst_12 : f32 to vector<8x8x128xf32>
    %19 = arith.select %17, %14, %18 : vector<8x8x128xi1>, vector<8x8x128xf32>
    %cst_13 = arith.constant dense<0xFF800000> : vector<8x128xf32>
    %20 = vector.multi_reduction <maximumf>, %19, %cst_13 [1] : vector<8x8x128xf32> to vector<8x128xf32>
    %21 = vector.shape_cast %20 : vector<8x128xf32> to vector<8x1x128xf32>
    %22 = vector.broadcast %21 : vector<8x1x128xf32> to vector<8x8x128xf32>
    %23 = arith.subf %19, %22 : vector<8x8x128xf32>
    %24 = math.exp %23 : vector<8x8x128xf32>
    %cst_14 = arith.constant dense<0.000000e+00> : vector<8x128xf32>
    %25 = vector.multi_reduction <add>, %24, %cst_14 [1] : vector<8x8x128xf32> to vector<8x128xf32>
    %26 = arith.mulf %24, %0 : vector<8x8x128xf32>
    %cst_15 = arith.constant dense<0.000000e+00> : vector<8x128xf32>
    %27 = vector.multi_reduction <add>, %26, %cst_15 [1] : vector<8x8x128xf32> to vector<8x128xf32>
    %28 = tpu.reciprocal %25 {approx = true} : vector<8x128xf32> -> vector<8x128xf32>
    %29 = arith.mulf %25, %28 : vector<8x128xf32>
    %cst_16 = arith.constant 2.000000e+00 : f32
    %30 = vector.broadcast %cst_16 : f32 to vector<8x128xf32>
    %31 = arith.subf %30, %29 : vector<8x128xf32>
    %32 = arith.mulf %28, %31 : vector<8x128xf32>
    %33 = arith.mulf %27, %32 : vector<8x128xf32>
    %c0_17 = arith.constant 0 : index
    %c0_18 = arith.constant 0 : index
    %34 = vector.load %arg6[%c0_17, %c0_18] : memref<8x128xf32, #tpu.memory_space<vmem>>, vector<8x128xf32>
    tpu.vector_store %arg6[%c0_17, %c0_18], %33 {strides = array<i32>} : memref<8x128xf32, #tpu.memory_space<vmem>>, vector<8x128xf32>,
    return
  }
  func.func @transform_0(%arg0: i32) -> (i32, i32, i32) {
    %c0_i32 = arith.constant 0 : i32
    %c0_i32_0 = arith.constant 0 : i32
    %c0_i32_1 = arith.constant 0 : i32
    return %arg0, %c0_i32, %c0_i32_0 : i32, i32, i32
  }
  func.func @transform_1(%arg0: i32) -> (i32, i32) {
    %c0_i32 = arith.constant 0 : i32
    %c0_i32_0 = arith.constant 0 : i32
    %c0_i32_1 = arith.constant 0 : i32
    return %c0_i32, %c0_i32_0 : i32, i32
  }
  func.func @transform_2(%arg0: i32) -> (i32, i32) {
    %c0_i32 = arith.constant 0 : i32
    %c0_i32_0 = arith.constant 0 : i32
    %c0_i32_1 = arith.constant 0 : i32
    return %c0_i32, %c0_i32_0 : i32, i32
  }
  func.func @transform_3(%arg0: i32) -> (i32, i32) {
    %c0_i32 = arith.constant 0 : i32
    %c0_i32_0 = arith.constant 0 : i32
    %c0_i32_1 = arith.constant 0 : i32
    return %c0_i32, %c0_i32_0 : i32, i32
  }
  func.func @transform_4(%arg0: i32) -> (i32, i32) {
    %c0_i32 = arith.constant 0 : i32
    %c0_i32_0 = arith.constant 0 : i32
    %c0_i32_1 = arith.constant 0 : i32
    return %c0_i32, %c0_i32_0 : i32, i32
  }
  func.func @transform_5(%arg0: i32) -> (i32, i32) {
    %c0_i32 = arith.constant 0 : i32
    %c0_i32_0 = arith.constant 0 : i32
    return %arg0, %c0_i32 : i32, i32
  }
}

module attributes {stable_mosaic.version = 11 : i64} {
  func.func @kernel(%arg0: i32, %arg1: memref<8x8x128xf32, #tpu.memory_space<vmem>>, %arg2: memref<128x128xf32, #tpu.memory_space<vmem>>, %arg3: memref<1x128xf32, #tpu.memory_space<vmem>>, %arg4: memref<128x128xf32, #tpu.memory_space<vmem>>, %arg5: memref<1x128xf32, #tpu.memory_space<vmem>>, %arg6: memref<8x128xf32, #tpu.memory_space<vmem>>) attributes {dimension_semantics = [#tpu.dimension_semantics<parallel>], iteration_bounds = array<i64: 2>, scalar_prefetch = 0 : i64, scratch_operands = 0 : i64, tpu.core_type = #tpu.core_type<tc>, window_params = [{transform_indices = @transform_0, window_bounds = array<i64: 8, 8, 128>}, {pipeline_mode = #tpu.pipeline_mode<synchronous>, transform_indices = @transform_1, window_bounds = array<i64: 128, 128>}, {pipeline_mode = #tpu.pipeline_mode<synchronous>, transform_indices = @transform_2, window_bounds = array<i64: 1, 128>}, {pipeline_mode = #tpu.pipeline_mode<synchronous>, transform_indices = @transform_3, window_bounds = array<i64: 128, 128>}, {pipeline_mode = #tpu.pipeline_mode<synchronous>, transform_indices = @transform_4, window_bounds = array<i64: 1, 128>}, {transform_indices = @transform_5, window_bounds = array<i64: 8, 128>}]} {
    %c0 = arith.constant 0 : index
    %c0_0 = arith.constant 0 : index
    %c0_1 = arith.constant 0 : index
    %0 = vector.load %arg1[%c0, %c0_0, %c0_1] : memref<8x8x128xf32, #tpu.memory_space<vmem>>, vector<8x8x128xf32>
    %1 = vector.shape_cast %0 : vector<8x8x128xf32> to vector<64x128xf32>
    %c0_2 = arith.constant 0 : index
    %c0_3 = arith.constant 0 : index
    %2 = vector.load %arg2[%c0_2, %c0_3] : memref<128x128xf32, #tpu.memory_space<vmem>>, vector<128x128xf32>
    %cst = arith.constant dense<0.000000e+00> : vector<64x128xf32>
    %3 = tpu.matmul %1, %2, %cst {dimension_numbers = #tpu.dot_dimension_numbers<[1], [0], [0], [1], [0, 0, 1, 1], [], []>} : vector<64x128xf32>, vector<128x128xf32>, vector<64x128xf32> -> vector<64x128xf32>
    %c0_4 = arith.constant 0 : index
    %c0_5 = arith.constant 0 : index
    %4 = vector.load %arg3[%c0_4, %c0_5] : memref<1x128xf32, #tpu.memory_space<vmem>>, vector<1x128xf32>
    %5 = vector.broadcast %4 : vector<1x128xf32> to vector<64x128xf32>
    %6 = arith.addf %3, %5 : vector<64x128xf32>
    %cst_6 = arith.constant 0.000000e+00 : f32
    %7 = vector.broadcast %cst_6 : f32 to vector<64x128xf32>
    %8 = arith.maximumf %6, %7 : vector<64x128xf32>
    %c0_7 = arith.constant 0 : index
    %c0_8 = arith.constant 0 : index
    %9 = vector.load %arg4[%c0_7, %c0_8] : memref<128x128xf32, #tpu.memory_space<vmem>>, vector<128x128xf32>
    %cst_9 = arith.constant dense<0.000000e+00> : vector<64x128xf32>
    %10 = tpu.matmul %8, %9, %cst_9 {dimension_numbers = #tpu.dot_dimension_numbers<[1], [0], [0], [1], [0, 0, 1, 1], [], []>} : vector<64x128xf32>, vector<128x128xf32>, vector<64x128xf32> -> vector<64x128xf32>
    %c0_10 = arith.constant 0 : index
    %c0_11 = arith.constant 0 : index
    %11 = vector.load %arg5[%c0_10, %c0_11] : memref<1x128xf32, #tpu.memory_space<vmem>>, vector<1x128xf32>
    %12 = vector.broadcast %11 : vector<1x128xf32> to vector<64x128xf32>
    %13 = arith.addf %10, %12 : vector<64x128xf32>
    %14 = vector.shape_cast %13 : vector<64x128xf32> to vector<8x8x128xf32>
    %15 = tpu.iota {dimensions = array<i32: 1>} : vector<8x8x128xi32>
    %c5_i32 = arith.constant 5 : i32
    %16 = vector.broadcast %c5_i32 : i32 to vector<8x8x128xi32>
    %17 = arith.cmpi slt, %15, %16 : vector<8x8x128xi32>
    %cst_12 = arith.constant -1.000000e+30 : f32
    %18 = vector.broadcast %cst_12 : f32 to vector<8x8x128xf32>
    %19 = arith.select %17, %14, %18 : vector<8x8x128xi1>, vector<8x8x128xf32>
    %cst_13 = arith.constant dense<0xFF800000> : vector<8x128xf32>
    %20 = vector.multi_reduction <maximumf>, %19, %cst_13 [1] : vector<8x8x128xf32> to vector<8x128xf32>
    %21 = vector.shape_cast %20 : vector<8x128xf32> to vector<8x1x128xf32>
    %22 = vector.broadcast %21 : vector<8x1x128xf32> to vector<8x8x128xf32>
    %23 = arith.subf %19, %22 : vector<8x8x128xf32>
    %24 = math.exp %23 : vector<8x8x128xf32>
    %cst_14 = arith.constant dense<0.000000e+00> : vector<8x128xf32>
    %25 = vector.multi_reduction <add>, %24, %cst_14 [1] : vector<8x8x128xf32> to vector<8x128xf32>
    %26 = arith.mulf %24, %0 : vector<8x8x128xf32>
    %cst_15 = arith.constant dense<0.000000e+00> : vector<8x128xf32>
    %27 = vector.multi_reduction <add>, %26, %cst_15 [1] : vector<8x8x128xf32> to vector<8x128xf32>
    %28 = tpu.reciprocal %25 {approx = true} : vector<8x128xf32> -> vector<8x128xf32>
    %29 = arith.mulf %25, %28 : vector<8x128xf32>
    %cst_16 = arith.constant 2.000000e+00 : f32
    %30 = vector.broadcast %cst_16 : f32 to vector<8x128xf32>
    %31 = arith.subf %30, %29 : vector<8x128xf32>
    %32 = arith.mulf %28, %31 : vector<8x128xf32>
    %33 = arith.mulf %27, %32 : vector<8x128xf32>
    %c0_17 = arith.constant 0 : index
    %c0_18 = arith.constant 0 : index
    %34 = vector.load %arg6[%c0_17, %c0_18] : memref<8x128xf32, #tpu.memory_space<vmem>>, vector<8x128xf32>
    tpu.vector_store %arg6[%c0_17, %c0_18], %33 {strides = array<i32>} : memref<8x128xf32, #tpu.memory_space<vmem>>, vector<8x128xf32>,
    return
  }
  func.func @transform_0(%arg0: i32) -> (i32, i32, i32) {
    %c0_i32 = arith.constant 0 : i32
    %c0_i32_0 = arith.constant 0 : i32
    %c0_i32_1 = arith.constant 0 : i32
    return %arg0, %c0_i32, %c0_i32_0 : i32, i32, i32
  }
  func.func @transform_1(%arg0: i32) -> (i32, i32) {
    %c0_i32 = arith.constant 0 : i32
    %c0_i32_0 = arith.constant 0 : i32
    %c0_i32_1 = arith.constant 0 : i32
    return %c0_i32, %c0_i32_0 : i32, i32
  }
  func.func @transform_2(%arg0: i32) -> (i32, i32) {
    %c0_i32 = arith.constant 0 : i32
    %c0_i32_0 = arith.constant 0 : i32
    %c0_i32_1 = arith.constant 0 : i32
    return %c0_i32, %c0_i32_0 : i32, i32
  }
  func.func @transform_3(%arg0: i32) -> (i32, i32) {
    %c0_i32 = arith.constant 0 : i32
    %c0_i32_0 = arith.constant 0 : i32
    %c0_i32_1 = arith.constant 0 : i32
    return %c0_i32, %c0_i32_0 : i32, i32
  }
  func.func @transform_4(%arg0: i32) -> (i32, i32) {
    %c0_i32 = arith.constant 0 : i32
    %c0_i32_0 = arith.constant 0 : i32
    %c0_i32_1 = arith.constant 0 : i32
    return %c0_i32, %c0_i32_0 : i32, i32
  }
  func.func @transform_5(%arg0: i32) -> (i32, i32) {
    %c0_i32 = arith.constant 0 : i32
    %c0_i32_0 = arith.constant 0 : i32
    return %arg0, %c0_i32 : i32, i32
  }
}

</mosaic_0001>

<llo_original>
// kernel: tpu_custom_call.1
$region0: #{tpu_custom_call.1}
  #allocation0 [shape = 'u32[]', space=smem, size = 0x4, offset = 0x4, fixed_abs, tag = 'smem constant byte address 0x4 - core index']
  #allocation1 [shape = 'u32[144,128]{1,0:T(1,128)}', space=vmem, size = 0x12000, scoped, tag = 'internal scratch']
  %s0 = inlined_call_operand.hbm [shape: f32[16,8,128], index: 0, kind: input, shape index: {}]
  %s1 = inlined_call_operand.hbm [shape: f32[128,128], index: 1, kind: input, shape index: {}]
  %s2 = inlined_call_operand.vmem [shape: f32[1,128], index: 2, kind: input, shape index: {}]
  %s3 = inlined_call_operand.hbm [shape: f32[128,128], index: 3, kind: input, shape index: {}]
  %s4 = inlined_call_operand.vmem [shape: f32[1,128], index: 4, kind: input, shape index: {}]
  %s5 = inlined_call_operand.hbm [shape: f32[16,128], index: 5, kind: output, shape index: {}]
  %s6 = sld [smem:[#allocation0]]
  $region65: #{tpu_custom_call.1} parent=0
    _
  %s8 = ssub.s32 1, %s6
  %s9 = scalar_select 0, %s8, %s6
  $region1: #{tpu_custom_call.1} parent=0
    #allocation2 [shape = 'u8[65536]{0}', space=vmem, size = 0x10000, scoped, tag = 'input window, operand 0']
    #allocation3 [shape = 's32[2]{0}', space=sflag, size = 0x8, scoped, tag = 'scoped memory for tpu_custom_call.1']
    #allocation4 [shape = 's32[2]{0}', space=sflag, size = 0x8, scoped, tag = 'scoped memory for tpu_custom_call.1']
    #allocation5 [shape = 'u8[65536]{0}', space=vmem, size = 0x10000, scoped, tag = 'input window, operand 1, single buffered']
    #allocation6 [shape = 's32[1]{0}', space=sflag, size = 0x4, scoped, tag = 'scoped memory for tpu_custom_call.1']
    #allocation7 [shape = 'u8[65536]{0}', space=vmem, size = 0x10000, scoped, tag = 'input window, operand 3, single buffered']
    #allocation8 [shape = 'u8[8192]{0}', space=vmem, size = 0x2000, scoped, tag = 'output window, operand 0']
    %10 = vsyncpa [#allocation3], 0
    %s11 = scalar_lea.sflag [#allocation3], 1
    %12 = vsyncpa %s11, 0
    %13 = vsyncpa [#allocation6], 0
    %14 = vsyncpa [#allocation4], 0
    %s15 = scalar_lea.sflag [#allocation4], 1
    %16 = vsyncpa %s15, 0
    loop: start=0, step=1, limit=4
    $region2: #{tpu_custom_call.1} parent=1 // loop_pre_header
      _
    $region3: #{tpu_custom_call.1} parent=1 // loop_header
      %s18 = sphi 0, %s22
      %p19 = scmp.ge.s32.totalorder %s18, 4
      %s28 = sphi 0, %s30
      %s31 = sphi 0, %s28
      %s32 = sphi 0, %s31
      %s48 = sphi 0, %s32
      %s52 = sphi 0, %s52
      %s54 = sphi 0, %s52
      %s55 = sphi 0, %s54
      %s69 = sphi 0, %s55
      %s73 = sphi 0, %s73
      %s75 = sphi 0, %s73
      %s76 = sphi 0, %s75
      %s90 = sphi 0, %s76
      %s94 = sphi 0, %s94
      %s96 = sphi 0, %s94
      %s97 = sphi 0, %s96
      %s111 = sphi 0, %s97
      %s115 = sphi 0, %s115
      %s117 = sphi 0, %s115
      %s118 = sphi 0, %s117
      %s132 = sphi 0, %s118
      %s138 = sphi 0, %s140
      %s141 = sphi 0, %s138
      %s142 = sphi 0, %s141
      %s158 = sphi 0, %s142
    $region4: #{tpu_custom_call.1} parent=1 // loop_header_branch
      %21 = sbr.rel (%p19) target = $region8
    $region5: #{tpu_custom_call.1} parent=1 // loop_body
      %s23 = ssub.s32 %s18, 1
      %s24 = ssub.s32 %s18, 2
      %s25 = sadd.s32 %s18, 1
      %s26 = ssub.s32 %s18, %s25
      %p27 = scmp.eq.s32.totalorder %s26, 0
      %s29 = sadd.s32 %s28, 1
      %s30 = scalar_select %p27, %s28, %s29
      %p33 = pneg %p27
      %p34 = scmp.eq.s32.totalorder %s18, 1
      %p35 = por %p33, %p34
      %p36 = scmp.ne.s32.totalorder %s28, %s31
      %p37 = scmp.eq.s32.totalorder %s18, 0
      %p38 = por %p36, %p37
      %p39 = scmp.ne.s32.totalorder %s28, %s31
      %p40 = scmp.eq.s32.totalorder %s23, 1
      %p41 = por %p39, %p40
      %p42 = scmp.ne.s32.totalorder %s31, %s32
      %p43 = scmp.eq.s32.totalorder %s23, 0
      %p44 = por %p42, %p43
      %p45 = scmp.ne.s32.totalorder %s31, %s32
      %p46 = scmp.eq.s32.totalorder %s24, 1
      %p47 = por %p45, %p46
      %p49 = scmp.ne.s32.totalorder %s32, %s48
      %p50 = scmp.eq.s32.totalorder %s24, 0
      %p51 = por %p49, %p50
      %s53 = sadd.s32 %s52, 1
      %p56 = scmp.eq.s32.totalorder %s18, 1
      %p57 = scmp.ne.s32.totalorder %s52, %s54
      %p58 = scmp.eq.s32.totalorder %s18, 0
      %p59 = por %p57, %p58
      %p60 = scmp.ne.s32.totalorder %s52, %s54
      %p61 = scmp.eq.s32.totalorder %s23, 1
      %p62 = por %p60, %p61
      %p63 = scmp.ne.s32.totalorder %s54, %s55
      %p64 = scmp.eq.s32.totalorder %s23, 0
      %p65 = por %p63, %p64
      %p66 = scmp.ne.s32.totalorder %s54, %s55
      %p67 = scmp.eq.s32.totalorder %s24, 1
      %p68 = por %p66, %p67
      %p70 = scmp.ne.s32.totalorder %s55, %s69
      %p71 = scmp.eq.s32.totalorder %s24, 0
      %p72 = por %p70, %p71
      %s74 = sadd.s32 %s73, 1
      %p77 = scmp.eq.s32.totalorder %s18, 1
      %p78 = scmp.ne.s32.totalorder %s73, %s75
      %p79 = scmp.eq.s32.totalorder %s18, 0
      %p80 = por %p78, %p79
      %p81 = scmp.ne.s32.totalorder %s73, %s75
      %p82 = scmp.eq.s32.totalorder %s23, 1
      %p83 = por %p81, %p82
      %p84 = scmp.ne.s32.totalorder %s75, %s76
      %p85 = scmp.eq.s32.totalorder %s23, 0
      %p86 = por %p84, %p85
      %p87 = scmp.ne.s32.totalorder %s75, %s76
      %p88 = scmp.eq.s32.totalorder %s24, 1
      %p89 = por %p87, %p88
      %p91 = scmp.ne.s32.totalorder %s76, %s90
      %p92 = scmp.eq.s32.totalorder %s24, 0
      %p93 = por %p91, %p92
      %s95 = sadd.s32 %s94, 1
      %p98 = scmp.eq.s32.totalorder %s18, 1
      %p99 = scmp.ne.s32.totalorder %s94, %s96
      %p100 = scmp.eq.s32.totalorder %s18, 0
      %p101 = por %p99, %p100
      %p102 = scmp.ne.s32.totalorder %s94, %s96
      %p103 = scmp.eq.s32.totalorder %s23, 1
      %p104 = por %p102, %p103
      %p105 = scmp.ne.s32.totalorder %s96, %s97
      %p106 = scmp.eq.s32.totalorder %s23, 0
      %p107 = por %p105, %p106
      %p108 = scmp.ne.s32.totalorder %s96, %s97
      %p109 = scmp.eq.s32.totalorder %s24, 1
      %p110 = por %p108, %p109
      %p112 = scmp.ne.s32.totalorder %s97, %s111
      %p113 = scmp.eq.s32.totalorder %s24, 0
      %p114 = por %p112, %p113
      %s116 = sadd.s32 %s115, 1
      %p119 = scmp.eq.s32.totalorder %s18, 1
      %p120 = scmp.ne.s32.totalorder %s115, %s117
      %p121 = scmp.eq.s32.totalorder %s18, 0
      %p122 = por %p120, %p121
      %p123 = scmp.ne.s32.totalorder %s115, %s117
      %p124 = scmp.eq.s32.totalorder %s23, 1
      %p125 = por %p123, %p124
      %p126 = scmp.ne.s32.totalorder %s117, %s118
      %p127 = scmp.eq.s32.totalorder %s23, 0
      %p128 = por %p126, %p127
      %p129 = scmp.ne.s32.totalorder %s117, %s118
      %p130 = scmp.eq.s32.totalorder %s24, 1
      %p131 = por %p129, %p130
      %p133 = scmp.ne.s32.totalorder %s118, %s132
      %p134 = scmp.eq.s32.totalorder %s24, 0
      %p135 = por %p133, %p134
      %s136 = ssub.s32 %s18, %s25
      %p137 = scmp.eq.s32.totalorder %s136, 0
      %s139 = sadd.s32 %s138, 1
      %s140 = scalar_select %p137, %s138, %s139
      %p143 = pneg %p137
      %p144 = scmp.eq.s32.totalorder %s18, 1
      %p145 = por %p143, %p144
      %p146 = scmp.ne.s32.totalorder %s138, %s141
      %p147 = scmp.eq.s32.totalorder %s18, 0
      %p148 = por %p146, %p147
      %p149 = scmp.ne.s32.totalorder %s138, %s141
      %p150 = scmp.eq.s32.totalorder %s23, 1
      %p151 = por %p149, %p150
      %p152 = scmp.ne.s32.totalorder %s141, %s142
      %p153 = scmp.eq.s32.totalorder %s23, 0
      %p154 = por %p152, %p153
      %p155 = scmp.ne.s32.totalorder %s141, %s142
      %p156 = scmp.eq.s32.totalorder %s24, 1
      %p157 = por %p155, %p156
      %p159 = scmp.ne.s32.totalorder %s142, %s158
      %p160 = scmp.eq.s32.totalorder %s24, 0
      %p161 = por %p159, %p160
      %p162 = scmp.le.s32.totalorder 1, %s18
      %p163 = scmp.lt.s32.totalorder %s18, 3
      %p164 = pnand %p162, %p163
      %p165 = pneg %p164
      // Predicated region
      $region9: #{tpu_custom_call.1} parent=5 // pred_check
        _
      $region10: #{tpu_custom_call.1} parent=5 // pred_check_branch
        %167 = sbr.rel (%p164) target = $region12
      $region11: #{tpu_custom_call.1} parent=5 // pred_region
        %s168 = ssub.s32 %s18, 1
        // Predicated region
        $region13: #{tpu_custom_call.1} parent=11 // pred_check
          %p169 = pneg %p65
        $region14: #{tpu_custom_call.1} parent=11 // pred_check_branch
          %171 = sbr.rel (%p169) target = $region16
        $region15: #{tpu_custom_call.1} parent=11 // pred_region
          %s173 = ssub.s32 2048, 2048
          %174 = vsyncadd [#allocation6], %s173
          %s175 = sshll.u32 [#allocation5], 4
          %s176 = int_to_ptr.vmem [resolvable:$true] %s175
          %181 = dma.hbm_to_vmem [thread:$0]  %s1, 2048, %s176, [#allocation6], 128, 128, 8
        $region16: #{tpu_custom_call.1} parent=11 // pred_fallthru
          _
        // Predicated region
        $region17: #{tpu_custom_call.1} parent=11 // pred_check
          %p182 = pneg %p86
        $region18: #{tpu_custom_call.1} parent=11 // pred_check_branch
          %184 = sbr.rel (%p182) target = $region20
        $region19: #{tpu_custom_call.1} parent=11 // pred_region
          _
        $region20: #{tpu_custom_call.1} parent=11 // pred_fallthru
          _
        // Predicated region
        $region21: #{tpu_custom_call.1} parent=11 // pred_check
          %p185 = pneg %p107
        $region22: #{tpu_custom_call.1} parent=11 // pred_check_branch
          %187 = sbr.rel (%p185) target = $region24
        $region23: #{tpu_custom_call.1} parent=11 // pred_region
          %s189 = ssub.s32 2048, 2048
          %190 = vsyncadd [#allocation6], %s189
          %s191 = sshll.u32 [#allocation7], 4
          %s192 = int_to_ptr.vmem [resolvable:$true] %s191
          %197 = dma.hbm_to_vmem [thread:$0]  %s3, 2048, %s192, [#allocation6], 128, 128, 8
        $region24: #{tpu_custom_call.1} parent=11 // pred_fallthru
          _
        // Predicated region
        $region25: #{tpu_custom_call.1} parent=11 // pred_check
          %p198 = pneg %p128
        $region26: #{tpu_custom_call.1} parent=11 // pred_check_branch
          %200 = sbr.rel (%p198) target = $region28
        $region27: #{tpu_custom_call.1} parent=11 // pred_region
          _
        $region28: #{tpu_custom_call.1} parent=11 // pred_fallthru
          _
      $region12: #{tpu_custom_call.1} parent=5 // pred_fallthru
        _
      %p201 = scmp.lt.s32.totalorder %s18, 2
      // Predicated region
      $region29: #{tpu_custom_call.1} parent=5 // pred_check
        %p202 = pneg %p201
      $region30: #{tpu_custom_call.1} parent=5 // pred_check_branch
        %204 = sbr.rel (%p202) target = $region32
      $region31: #{tpu_custom_call.1} parent=5 // pred_region
        // Predicated region
        $region33: #{tpu_custom_call.1} parent=31 // pred_check
          %p205 = pneg %p38
        $region34: #{tpu_custom_call.1} parent=31 // pred_check_branch
          %207 = sbr.rel (%p205) target = $region36
        $region35: #{tpu_custom_call.1} parent=31 // pred_region
          %s208 = sand.u32 %s28, 1
          %s209 = scalar_lea.sflag [#allocation3], %s208
          %s210 = sand.u32 %s28, 1
          %s211 = smul.addr %s210, 64
          %s212 = scalar_lea.vmem [#allocation2], %s211
          %s213 = smul.u32 8, %s18
          %s215 = ssub.s32 1024, 1024
          %216 = vsyncadd %s209, %s215
          %s217 = smul.addr %s213, 128
          %s218 = scalar_lea.hbm %s0, %s217
          %s219 = sshll.u32 %s212, 4
          %s220 = int_to_ptr.vmem [resolvable:$true] %s219
          %225 = dma.hbm_to_vmem [thread:$0]  %s218, 1024, %s220, %s209, 128, 128, 8
        $region36: #{tpu_custom_call.1} parent=31 // pred_fallthru
          _
      $region32: #{tpu_custom_call.1} parent=5 // pred_fallthru
        _
      %p226 = scmp.le.s32.totalorder 1, %s18
      %p227 = scmp.lt.s32.totalorder %s18, 3
      %p228 = pnand %p226, %p227
      %p229 = pneg %p228
      // Predicated region
      $region37: #{tpu_custom_call.1} parent=5 // pred_check
        _
      $region38: #{tpu_custom_call.1} parent=5 // pred_check_branch
        %231 = sbr.rel (%p228) target = $region40
      $region39: #{tpu_custom_call.1} parent=5 // pred_region
        %s232 = ssub.s32 %s18, 1
        %s233 = sand.u32 %s31, 1
        %s234 = scalar_lea.sflag [#allocation3], %s233
        %s235 = sand.u32 %s31, 1
        %s236 = smul.addr %s235, 64
        %s237 = scalar_lea.vmem [#allocation2], %s236
        // Predicated region
        $region41: #{tpu_custom_call.1} parent=39 // pred_check
          %p238 = pneg %p44
        $region42: #{tpu_custom_call.1} parent=39 // pred_check_branch
          %240 = sbr.rel (%p238) target = $region44
        $region43: #{tpu_custom_call.1} parent=39 // pred_region
          %241 = dma.done %s234, 1024
        $region44: #{tpu_custom_call.1} parent=39 // pred_fallthru
          _
        // Predicated region
        $region45: #{tpu_custom_call.1} parent=39 // pred_check
          %p242 = pneg %p65
        $region46: #{tpu_custom_call.1} parent=39 // pred_check_branch
          %244 = sbr.rel (%p242) target = $region48
        $region47: #{tpu_custom_call.1} parent=39 // pred_region
          %245 = dma.done [#allocation6], 2048
        $region48: #{tpu_custom_call.1} parent=39 // pred_fallthru
          _
        // Predicated region
        $region49: #{tpu_custom_call.1} parent=39 // pred_check
          %p246 = pneg %p107
        $region50: #{tpu_custom_call.1} parent=39 // pred_check_branch
          %248 = sbr.rel (%p246) target = $region52
        $region51: #{tpu_custom_call.1} parent=39 // pred_region
          %249 = dma.done [#allocation6], 2048
        $region52: #{tpu_custom_call.1} parent=39 // pred_fallthru
          _
        %s250 = sand.u32 %s31, 1
        %s251 = scalar_lea.sflag [#allocation3], %s250
        %s252 = sand.u32 %s31, 1
        %s253 = smul.addr %s252, 64
        %s254 = scalar_lea.vmem [#allocation2], %s253
        %p255 = pneg %p44
        %p256 = pneg %p41
        %p257 = pneg %p65
        %p258 = pneg %p62
        %p259 = pneg %p86
        %p260 = pneg %p83
        %p261 = pneg %p107
        %p262 = pneg %p104
        %p263 = pneg %p128
        %p264 = pneg %p125
        %p265 = pneg %p154
        %p266 = pneg %p151
        %s267 = sand.u32 %s141, 1
        %s268 = scalar_lea.sflag [#allocation4], %s267
        %s269 = sand.u32 %s141, 1
        %s270 = smul.addr %s269, 8
        %s271 = scalar_lea.vmem [#allocation8], %s270
        %s272 = smul.u32 8, %s23
        %v273 = vld [vmem:[%s237] sm:$0xff]
        %v274 = vld [vmem:[%s237 + $0x8] sm:$0xff]
        %v275 = vld [vmem:[%s237 + $0x10] sm:$0xff]
        %v276 = vld [vmem:[%s237 + $0x18] sm:$0xff]
        %v277 = vld [vmem:[%s237 + $0x20] sm:$0xff]
        %v278 = vld [vmem:[%s237 + $0x28] sm:$0xff]
        %v279 = vld [vmem:[%s237 + $0x30] sm:$0xff]
        %v280 = vld [vmem:[%s237 + $0x38] sm:$0xff]
        %v281 = vld [vmem:[#allocation5] sm:$0xff]
        %v282 = vld [vmem:[#allocation5 + $0x8] sm:$0xff]
        %v283 = vld [vmem:[#allocation5 + $0x10] sm:$0xff]
        %v284 = vld [vmem:[#allocation5 + $0x18] sm:$0xff]
        %v285 = vld [vmem:[#allocation5 + $0x20] sm:$0xff]
        %v286 = vld [vmem:[#allocation5 + $0x28] sm:$0xff]
        %v287 = vld [vmem:[#allocation5 + $0x30] sm:$0xff]
        %v288 = vld [vmem:[#allocation5 + $0x38] sm:$0xff]
        %v289 = vld [vmem:[#allocation5 + $0x40] sm:$0xff]
        %v290 = vld [vmem:[#allocation5 + $0x48] sm:$0xff]
        %v291 = vld [vmem:[#allocation5 + $0x50] sm:$0xff]
        %v292 = vld [vmem:[#allocation5 + $0x58] sm:$0xff]
        %v293 = vld [vmem:[#allocation5 + $0x60] sm:$0xff]
        %v294 = vld [vmem:[#allocation5 + $0x68] sm:$0xff]
        %v295 = vld [vmem:[#allocation5 + $0x70] sm:$0xff]
        %v296 = vld [vmem:[#allocation5 + $0x78] sm:$0xff]
        %v297 = vld [vmem:[%s2] sm:$0x1]
        %v299 = vlaneseq
        %v300 = vshrl.u32 %v299, 7
        %v301 = vsub.s32 0, %v300
        %v302 = vrot.slane %v297, %v301
        %304 = vmatprep.subr.mxu0 0.0
        %305 = vmatpush1.msra.mxu0 %v296
        %306 = vmatprep.subr.mxu0 0.0
        %307 = vmatpush1.msra.mxu0 %v295
        %308 = vmatprep.subr.mxu0 0.0
        %309 = vmatpush1.msra.mxu0 %v294
        %310 = vmatprep.subr.mxu0 0.0
        %311 = vmatpush1.msra.mxu0 %v293
        %312 = vmatprep.subr.mxu0 0.0
        %313 = vmatpush1.msra.mxu0 %v292
        %314 = vmatprep.subr.mxu0 0.0
        %315 = vmatpush1.msra.mxu0 %v291
        %316 = vmatprep.subr.mxu0 0.0
        %317 = vmatpush1.msra.mxu0 %v290
        %318 = vmatprep.subr.mxu0 0.0
        %319 = vmatpush1.msra.mxu0 %v289
        %320 = vmatprep.subr.mxu0 0.0
        %321 = vmatpush1.msra.mxu0 %v288
        %322 = vmatprep.subr.mxu0 0.0
        %323 = vmatpush1.msra.mxu0 %v287
        %324 = vmatprep.subr.mxu0 0.0
        %325 = vmatpush1.msra.mxu0 %v286
        %326 = vmatprep.subr.mxu0 0.0
        %327 = vmatpush1.msra.mxu0 %v285
        %328 = vmatprep.subr.mxu0 0.0
        %329 = vmatpush1.msra.mxu0 %v284
        %330 = vmatprep.subr.mxu0 0.0
        %331 = vmatpush1.msra.mxu0 %v283
        %332 = vmatprep.subr.mxu0 0.0
        %333 = vmatpush1.msra.mxu0 %v282
        %334 = vmatprep.subr.mxu0 0.0
        %335 = vmatpush1.msra.mxu0 %v281
        %336 = vmatprep.subr.mxu0 0.0
        %337 = vmatpush2.msra.mxu0 0.0
        %338 = vmatprep.subr.mxu0 0.0
        %339 = vmatpush2.msra.mxu0 0.0
        %340 = vmatprep.subr.mxu0 0.0
        %341 = vmatpush2.msra.mxu0 0.0
        %342 = vmatprep.subr.mxu0 0.0
        %343 = vmatpush2.msra.mxu0 0.0
        %344 = vmatprep.subr.mxu0 0.0
        %345 = vmatpush2.msra.mxu0 0.0
        %346 = vmatprep.subr.mxu0 0.0
        %347 = vmatpush2.msra.mxu0 0.0
        %348 = vmatprep.subr.mxu0 0.0
        %349 = vmatpush2.msra.mxu0 0.0
        %350 = vmatprep.subr.mxu0 0.0
        %351 = vmatpush2.msra.mxu0 0.0
        %352 = vmatprep.subr.mxu0 0.0
        %353 = vmatpush2.msra.mxu0 0.0
        %354 = vmatprep.subr.mxu0 0.0
        %355 = vmatpush2.msra.mxu0 0.0
        %356 = vmatprep.subr.mxu0 0.0
        %357 = vmatpush2.msra.mxu0 0.0
        %358 = vmatprep.subr.mxu0 0.0
        %359 = vmatpush2.msra.mxu0 0.0
        %360 = vmatprep.subr.mxu0 0.0
        %361 = vmatpush2.msra.mxu0 0.0
        %362 = vmatprep.subr.mxu0 0.0
        %363 = vmatpush2.msra.mxu0 0.0
        %364 = vmatprep.subr.mxu0 0.0
        %365 = vmatpush2.msra.mxu0 0.0
        %366 = vmatprep.subr.mxu0 0.0
        %367 = vmatpush2.msra.mxu0 0.0
        %368 = vmatprep.mubr.f32.mxu0 0.0
        %369 = vmatmul.mubr.f32.gmra.mxu0 %v273
        %v370 = vpop.f32.mrf.mxu0
        %v371 = vadd.f32 %v302, %v370
        %v372 = vpop.f32.mrf.mxu0
        %373 = vmatprep.mubr.f32.mxu0 0.0
        %374 = vmatmul.mubr.f32.gmra.mxu0 %v274
        %v375 = vpop.f32.mrf.mxu0
        %v376 = vadd.f32 %v302, %v375
        %v377 = vpop.f32.mrf.mxu0
        %378 = vmatprep.mubr.f32.mxu0 0.0
        %379 = vmatmul.mubr.f32.gmra.mxu0 %v275
        %v380 = vpop.f32.mrf.mxu0
        %v381 = vadd.f32 %v302, %v380
        %v382 = vpop.f32.mrf.mxu0
        %383 = vmatprep.mubr.f32.mxu0 0.0
        %384 = vmatmul.mubr.f32.gmra.mxu0 %v276
        %v385 = vpop.f32.mrf.mxu0
        %v386 = vadd.f32 %v302, %v385
        %v387 = vpop.f32.mrf.mxu0
        %388 = vmatprep.mubr.f32.mxu0 0.0
        %389 = vmatmul.mubr.f32.gmra.mxu0 %v277
        %v390 = vpop.f32.mrf.mxu0
        %v391 = vadd.f32 %v302, %v390
        %v392 = vpop.f32.mrf.mxu0
        %393 = vmatprep.mubr.f32.mxu0 0.0
        %394 = vmatmul.mubr.f32.gmra.mxu0 %v278
        %v395 = vpop.f32.mrf.mxu0
        %v396 = vadd.f32 %v302, %v395
        %v397 = vpop.f32.mrf.mxu0
        %398 = vmatprep.mubr.f32.mxu0 0.0
        %399 = vmatmul.mubr.f32.gmra.mxu0 %v279
        %v400 = vpop.f32.mrf.mxu0
        %v401 = vadd.f32 %v302, %v400
        %v402 = vpop.f32.mrf.mxu0
        %403 = vmatprep.mubr.f32.mxu0 0.0
        %404 = vmatmul.mubr.f32.gmra.mxu0 %v280
        %v405 = vpop.f32.mrf.mxu0
        %v406 = vadd.f32 %v302, %v405
        %v407 = vpop.f32.mrf.mxu0
        %408 = vdwg.mxu0
        %v409 = vmax.f32 %v371, 0.0
        %v410 = vmax.f32 %v376, 0.0
        %v411 = vmax.f32 %v381, 0.0
        %v412 = vmax.f32 %v386, 0.0
        %v413 = vmax.f32 %v391, 0.0
        %v414 = vmax.f32 %v396, 0.0
        %v415 = vmax.f32 %v401, 0.0
        %v416 = vmax.f32 %v406, 0.0
        %v417 = vld [vmem:[#allocation7] sm:$0xff]
        %v418 = vld [vmem:[#allocation7 + $0x8] sm:$0xff]
        %v419 = vld [vmem:[#allocation7 + $0x10] sm:$0xff]
        %v420 = vld [vmem:[#allocation7 + $0x18] sm:$0xff]
        %v421 = vld [vmem:[#allocation7 + $0x20] sm:$0xff]
        %v422 = vld [vmem:[#allocation7 + $0x28] sm:$0xff]
        %v423 = vld [vmem:[#allocation7 + $0x30] sm:$0xff]
        %v424 = vld [vmem:[#allocation7 + $0x38] sm:$0xff]
        %v425 = vld [vmem:[#allocation7 + $0x40] sm:$0xff]
        %v426 = vld [vmem:[#allocation7 + $0x48] sm:$0xff]
        %v427 = vld [vmem:[#allocation7 + $0x50] sm:$0xff]
        %v428 = vld [vmem:[#allocation7 + $0x58] sm:$0xff]
        %v429 = vld [vmem:[#allocation7 + $0x60] sm:$0xff]
        %v430 = vld [vmem:[#allocation7 + $0x68] sm:$0xff]
        %v431 = vld [vmem:[#allocation7 + $0x70] sm:$0xff]
        %v432 = vld [vmem:[#allocation7 + $0x78] sm:$0xff]
        %v433 = vld [vmem:[%s4] sm:$0x1]
        %v435 = vlaneseq
        %v436 = vshrl.u32 %v435, 7
        %v437 = vsub.s32 0, %v436
        %v438 = vrot.slane %v433, %v437
        %440 = vmatprep.subr.mxu0 0.0
        %441 = vmatpush1.msra.mxu0 %v432
        %442 = vmatprep.subr.mxu0 0.0
        %443 = vmatpush1.msra.mxu0 %v431
        %444 = vmatprep.subr.mxu0 0.0
        %445 = vmatpush1.msra.mxu0 %v430
        %446 = vmatprep.subr.mxu0 0.0
        %447 = vmatpush1.msra.mxu0 %v429
        %448 = vmatprep.subr.mxu0 0.0
        %449 = vmatpush1.msra.mxu0 %v428
        %450 = vmatprep.subr.mxu0 0.0
        %451 = vmatpush1.msra.mxu0 %v427
        %452 = vmatprep.subr.mxu0 0.0
        %453 = vmatpush1.msra.mxu0 %v426
        %454 = vmatprep.subr.mxu0 0.0
        %455 = vmatpush1.msra.mxu0 %v425
        %456 = vmatprep.subr.mxu0 0.0
        %457 = vmatpush1.msra.mxu0 %v424
        %458 = vmatprep.subr.mxu0 0.0
        %459 = vmatpush1.msra.mxu0 %v423
        %460 = vmatprep.subr.mxu0 0.0
        %461 = vmatpush1.msra.mxu0 %v422
        %462 = vmatprep.subr.mxu0 0.0
        %463 = vmatpush1.msra.mxu0 %v421
        %464 = vmatprep.subr.mxu0 0.0
        %465 = vmatpush1.msra.mxu0 %v420
        %466 = vmatprep.subr.mxu0 0.0
        %467 = vmatpush1.msra.mxu0 %v419
        %468 = vmatprep.subr.mxu0 0.0
        %469 = vmatpush1.msra.mxu0 %v418
        %470 = vmatprep.subr.mxu0 0.0
        %471 = vmatpush1.msra.mxu0 %v417
        %472 = vmatprep.subr.mxu0 0.0
        %473 = vmatpush2.msra.mxu0 0.0
        %474 = vmatprep.subr.mxu0 0.0
        %475 = vmatpush2.msra.mxu0 0.0
        %476 = vmatprep.subr.mxu0 0.0
        %477 = vmatpush2.msra.mxu0 0.0
        %478 = vmatprep.subr.mxu0 0.0
        %479 = vmatpush2.msra.mxu0 0.0
        %480 = vmatprep.subr.mxu0 0.0
        %481 = vmatpush2.msra.mxu0 0.0
        %482 = vmatprep.subr.mxu0 0.0
        %483 = vmatpush2.msra.mxu0 0.0
        %484 = vmatprep.subr.mxu0 0.0
        %485 = vmatpush2.msra.mxu0 0.0
        %486 = vmatprep.subr.mxu0 0.0
        %487 = vmatpush2.msra.mxu0 0.0
        %488 = vmatprep.subr.mxu0 0.0
        %489 = vmatpush2.msra.mxu0 0.0
        %490 = vmatprep.subr.mxu0 0.0
        %491 = vmatpush2.msra.mxu0 0.0
        %492 = vmatprep.subr.mxu0 0.0
        %493 = vmatpush2.msra.mxu0 0.0
        %494 = vmatprep.subr.mxu0 0.0
        %495 = vmatpush2.msra.mxu0 0.0
        %496 = vmatprep.subr.mxu0 0.0
        %497 = vmatpush2.msra.mxu0 0.0
        %498 = vmatprep.subr.mxu0 0.0
        %499 = vmatpush2.msra.mxu0 0.0
        %500 = vmatprep.subr.mxu0 0.0
        %501 = vmatpush2.msra.mxu0 0.0
        %502 = vmatprep.subr.mxu0 0.0
        %503 = vmatpush2.msra.mxu0 0.0
        %504 = vmatprep.mubr.f32.mxu0 0.0
        %505 = vmatmul.mubr.f32.gmra.mxu0 %v409
        %v506 = vpop.f32.mrf.mxu0
        %v507 = vadd.f32 %v438, %v506
        %v508 = vpop.f32.mrf.mxu0
        %509 = vmatprep.mubr.f32.mxu0 0.0
        %510 = vmatmul.mubr.f32.gmra.mxu0 %v410
        %v511 = vpop.f32.mrf.mxu0
        %v512 = vadd.f32 %v438, %v511
        %v513 = vpop.f32.mrf.mxu0
        %514 = vmatprep.mubr.f32.mxu0 0.0
        %515 = vmatmul.mubr.f32.gmra.mxu0 %v411
        %v516 = vpop.f32.mrf.mxu0
        %v517 = vadd.f32 %v438, %v516
        %v518 = vpop.f32.mrf.mxu0
        %519 = vmatprep.mubr.f32.mxu0 0.0
        %520 = vmatmul.mubr.f32.gmra.mxu0 %v412
        %v521 = vpop.f32.mrf.mxu0
        %v522 = vadd.f32 %v438, %v521
        %v523 = vpop.f32.mrf.mxu0
        %524 = vmatprep.mubr.f32.mxu0 0.0
        %525 = vmatmul.mubr.f32.gmra.mxu0 %v413
        %v526 = vpop.f32.mrf.mxu0
        %v527 = vadd.f32 %v438, %v526
        %v528 = vpop.f32.mrf.mxu0
        %529 = vmatprep.mubr.f32.mxu0 0.0
        %530 = vmatmul.mubr.f32.gmra.mxu0 %v414
        %v531 = vpop.f32.mrf.mxu0
        %v532 = vadd.f32 %v438, %v531
        %v533 = vpop.f32.mrf.mxu0
        %534 = vmatprep.mubr.f32.mxu0 0.0
        %535 = vmatmul.mubr.f32.gmra.mxu0 %v415
        %v536 = vpop.f32.mrf.mxu0
        %v537 = vadd.f32 %v438, %v536
        %v538 = vpop.f32.mrf.mxu0
        %539 = vmatprep.mubr.f32.mxu0 0.0
        %540 = vmatmul.mubr.f32.gmra.mxu0 %v416
        %v541 = vpop.f32.mrf.mxu0
        %v542 = vadd.f32 %v438, %v541
        %v543 = vpop.f32.mrf.mxu0
        %544 = vdwg.mxu0
        %v545 = vlaneseq
        %v546 = vshrl.u32 %v545, 7
        %vm547 = vcmp.lt.s32.totalorder %v546, 5
        %v548 = vsel %vm547, %v507, -1e+30
        %v549 = vsel %vm547, %v512, -1e+30
        %v550 = vsel %vm547, %v517, -1e+30
        %v551 = vsel %vm547, %v522, -1e+30
        %v552 = vsel %vm547, %v527, -1e+30
        %v553 = vsel %vm547, %v532, -1e+30
        %v554 = vsel %vm547, %v537, -1e+30
        %v555 = vsel %vm547, %v542, -1e+30
        %v556 = vrot.slane %v548, 4
        %v557 = vmax.f32 %v548, %v556
        %v558 = vrot.slane %v557, 2
        %v559 = vmax.f32 %v557, %v558
        %v560 = vrot.slane %v559, 1
        %v561 = vmax.f32 %v559, %v560
        %v562 = vrot.slane %v549, 4
        %v563 = vmax.f32 %v549, %v562
        %v564 = vrot.slane %v563, 2
        %v565 = vmax.f32 %v563, %v564
        %v566 = vrot.slane %v565, 1
        %v567 = vmax.f32 %v565, %v566
        %v568 = vrot.slane %v550, 4
        %v569 = vmax.f32 %v550, %v568
        %v570 = vrot.slane %v569, 2
        %v571 = vmax.f32 %v569, %v570
        %v572 = vrot.slane %v571, 1
        %v573 = vmax.f32 %v571, %v572
        %v574 = vrot.slane %v551, 4
        %v575 = vmax.f32 %v551, %v574
        %v576 = vrot.slane %v575, 2
        %v577 = vmax.f32 %v575, %v576
        %v578 = vrot.slane %v577, 1
        %v579 = vmax.f32 %v577, %v578
        %v580 = vrot.slane %v552, 4
        %v581 = vmax.f32 %v552, %v580
        %v582 = vrot.slane %v581, 2
        %v583 = vmax.f32 %v581, %v582
        %v584 = vrot.slane %v583, 1
        %v585 = vmax.f32 %v583, %v584
        %v586 = vrot.slane %v553, 4
        %v587 = vmax.f32 %v553, %v586
        %v588 = vrot.slane %v587, 2
        %v589 = vmax.f32 %v587, %v588
        %v590 = vrot.slane %v589, 1
        %v591 = vmax.f32 %v589, %v590
        %v592 = vrot.slane %v554, 4
        %v593 = vmax.f32 %v554, %v592
        %v594 = vrot.slane %v593, 2
        %v595 = vmax.f32 %v593, %v594
        %v596 = vrot.slane %v595, 1
        %v597 = vmax.f32 %v595, %v596
        %v598 = vrot.slane %v555, 4
        %v599 = vmax.f32 %v555, %v598
        %v600 = vrot.slane %v599, 2
        %v601 = vmax.f32 %v599, %v600
        %v602 = vrot.slane %v601, 1
        %v603 = vmax.f32 %v601, %v602
        %v604 = vsub.f32 %v548, %v561
        %v605 = vsub.f32 %v549, %v567
        %v606 = vsub.f32 %v550, %v573
        %v607 = vsub.f32 %v551, %v579
        %v608 = vsub.f32 %v552, %v585
        %v609 = vsub.f32 %v553, %v591
        %v610 = vsub.f32 %v554, %v597
        %v611 = vsub.f32 %v555, %v603
        %v612 = vmul.f32 %v604, 1.442695
        %v613 = vpow.pop %v612
        %v614 = vmul.f32 %v605, 1.442695
        %v615 = vpow.pop %v614
        %v616 = vmul.f32 %v606, 1.442695
        %v617 = vpow.pop %v616
        %v618 = vmul.f32 %v607, 1.442695
        %v619 = vpow.pop %v618
        %v620 = vmul.f32 %v608, 1.442695
        %v621 = vpow.pop %v620
        %v622 = vmul.f32 %v609, 1.442695
        %v623 = vpow.pop %v622
        %v624 = vmul.f32 %v610, 1.442695
        %v625 = vpow.pop %v624
        %v626 = vmul.f32 %v611, 1.442695
        %v627 = vpow.pop %v626
        %v628 = vrot.slane %v613, 4
        %v629 = vadd.f32 %v613, %v628
        %v630 = vrot.slane %v629, 2
        %v631 = vadd.f32 %v629, %v630
        %v632 = vrot.slane %v631, 1
        %v633 = vadd.f32 %v631, %v632
        %v634 = vrot.slane %v615, 4
        %v635 = vadd.f32 %v615, %v634
        %v636 = vrot.slane %v635, 2
        %v637 = vadd.f32 %v635, %v636
        %v638 = vrot.slane %v637, 1
        %v639 = vadd.f32 %v637, %v638
        %v640 = vrot.slane %v617, 4
        %v641 = vadd.f32 %v617, %v640
        %v642 = vrot.slane %v641, 2
        %v643 = vadd.f32 %v641, %v642
        %v644 = vrot.slane %v643, 1
        %v645 = vadd.f32 %v643, %v644
        %v646 = vrot.slane %v619, 4
        %v647 = vadd.f32 %v619, %v646
        %v648 = vrot.slane %v647, 2
        %v649 = vadd.f32 %v647, %v648
        %v650 = vrot.slane %v649, 1
        %v651 = vadd.f32 %v649, %v650
        %v652 = vrot.slane %v621, 4
        %v653 = vadd.f32 %v621, %v652
        %v654 = vrot.slane %v653, 2
        %v655 = vadd.f32 %v653, %v654
        %v656 = vrot.slane %v655, 1
        %v657 = vadd.f32 %v655, %v656
        %v658 = vrot.slane %v623, 4
        %v659 = vadd.f32 %v623, %v658
        %v660 = vrot.slane %v659, 2
        %v661 = vadd.f32 %v659, %v660
        %v662 = vrot.slane %v661, 1
        %v663 = vadd.f32 %v661, %v662
        %v664 = vrot.slane %v625, 4
        %v665 = vadd.f32 %v625, %v664
        %v666 = vrot.slane %v665, 2
        %v667 = vadd.f32 %v665, %v666
        %v668 = vrot.slane %v667, 1
        %v669 = vadd.f32 %v667, %v668
        %v670 = vrot.slane %v627, 4
        %v671 = vadd.f32 %v627, %v670
        %v672 = vrot.slane %v671, 2
        %v673 = vadd.f32 %v671, %v672
        %v674 = vrot.slane %v673, 1
        %v675 = vadd.f32 %v673, %v674
        %v676 = vmul.f32 %v613, %v273
        %v677 = vmul.f32 %v615, %v274
        %v678 = vmul.f32 %v617, %v275
        %v679 = vmul.f32 %v619, %v276
        %v680 = vmul.f32 %v621, %v277
        %v681 = vmul.f32 %v623, %v278
        %v682 = vmul.f32 %v625, %v279
        %v683 = vmul.f32 %v627, %v280
        %v684 = vrot.slane %v676, 4
        %v685 = vadd.f32 %v676, %v684
        %v686 = vrot.slane %v685, 2
        %v687 = vadd.f32 %v685, %v686
        %v688 = vrot.slane %v687, 1
        %v689 = vadd.f32 %v687, %v688
        %v690 = vrot.slane %v677, 4
        %v691 = vadd.f32 %v677, %v690
        %v692 = vrot.slane %v691, 2
        %v693 = vadd.f32 %v691, %v692
        %v694 = vrot.slane %v693, 1
        %v695 = vadd.f32 %v693, %v694
        %v696 = vrot.slane %v678, 4
        %v697 = vadd.f32 %v678, %v696
        %v698 = vrot.slane %v697, 2
        %v699 = vadd.f32 %v697, %v698
        %v700 = vrot.slane %v699, 1
        %v701 = vadd.f32 %v699, %v700
        %v702 = vrot.slane %v679, 4
        %v703 = vadd.f32 %v679, %v702
        %v704 = vrot.slane %v703, 2
        %v705 = vadd.f32 %v703, %v704
        %v706 = vrot.slane %v705, 1
        %v707 = vadd.f32 %v705, %v706
        %v708 = vrot.slane %v680, 4
        %v709 = vadd.f32 %v680, %v708
        %v710 = vrot.slane %v709, 2
        %v711 = vadd.f32 %v709, %v710
        %v712 = vrot.slane %v711, 1
        %v713 = vadd.f32 %v711, %v712
        %v714 = vrot.slane %v681, 4
        %v715 = vadd.f32 %v681, %v714
        %v716 = vrot.slane %v715, 2
        %v717 = vadd.f32 %v715, %v716
        %v718 = vrot.slane %v717, 1
        %v719 = vadd.f32 %v717, %v718
        %v720 = vrot.slane %v682, 4
        %v721 = vadd.f32 %v682, %v720
        %v722 = vrot.slane %v721, 2
        %v723 = vadd.f32 %v721, %v722
        %v724 = vrot.slane %v723, 1
        %v725 = vadd.f32 %v723, %v724
        %v726 = vrot.slane %v683, 4
        %v727 = vadd.f32 %v683, %v726
        %v728 = vrot.slane %v727, 2
        %v729 = vadd.f32 %v727, %v728
        %v730 = vrot.slane %v729, 1
        %v731 = vadd.f32 %v729, %v730
        %v732 = vrcp.pop %v633
        %v733 = vrcp.pop %v639
        %v734 = vrcp.pop %v645
        %v735 = vrcp.pop %v651
        %v736 = vrcp.pop %v657
        %v737 = vrcp.pop %v663
        %v738 = vrcp.pop %v669
        %v739 = vrcp.pop %v675
        %v740 = vmul.f32 %v633, %v732
        %v741 = vmul.f32 %v639, %v733
        %v742 = vmul.f32 %v645, %v734
        %v743 = vmul.f32 %v651, %v735
        %v744 = vmul.f32 %v657, %v736
        %v745 = vmul.f32 %v663, %v737
        %v746 = vmul.f32 %v669, %v738
        %v747 = vmul.f32 %v675, %v739
        %v748 = vsub.f32 2.0, %v740
        %v749 = vsub.f32 2.0, %v741
        %v750 = vsub.f32 2.0, %v742
        %v751 = vsub.f32 2.0, %v743
        %v752 = vsub.f32 2.0, %v744
        %v753 = vsub.f32 2.0, %v745
        %v754 = vsub.f32 2.0, %v746
        %v755 = vsub.f32 2.0, %v747
        %v756 = vmul.f32 %v732, %v748
        %v757 = vmul.f32 %v733, %v749
        %v758 = vmul.f32 %v734, %v750
        %v759 = vmul.f32 %v735, %v751
        %v760 = vmul.f32 %v736, %v752
        %v761 = vmul.f32 %v737, %v753
        %v762 = vmul.f32 %v738, %v754
        %v763 = vmul.f32 %v739, %v755
        %v764 = vmul.f32 %v689, %v756
        %v765 = vmul.f32 %v695, %v757
        %v766 = vmul.f32 %v701, %v758
        %v767 = vmul.f32 %v707, %v759
        %v768 = vmul.f32 %v713, %v760
        %v769 = vmul.f32 %v719, %v761
        %v770 = vmul.f32 %v725, %v762
        %v771 = vmul.f32 %v731, %v763
        %vm780 = vcmask 1041409
        %v781 = vsel %vm780, %v765, %v764
        %vm782 = vcmask 1042434
        %v783 = vsel %vm782, %v766, %v781
        %vm784 = vcmask 1043459
        %v785 = vsel %vm784, %v767, %v783
        %vm786 = vcmask 1044484
        %v787 = vsel %vm786, %v768, %v785
        %vm788 = vcmask 1045509
        %v789 = vsel %vm788, %v769, %v787
        %vm790 = vcmask 1046534
        %v791 = vsel %vm790, %v770, %v789
        %vm792 = vcmask 1047559
        %v793 = vsel %vm792, %v771, %v791
        %795 = vst [vmem:[%s271] sm:$0xff] %v793
        %s796 = sand.u32 %s141, 1
        %s797 = scalar_lea.sflag [#allocation4], %s796
        %s798 = sand.u32 %s141, 1
        %s799 = smul.addr %s798, 8
        %s800 = scalar_lea.vmem [#allocation8], %s799
        // Predicated region
        $region53: #{tpu_custom_call.1} parent=39 // pred_check
          %p801 = pneg %p151
        $region54: #{tpu_custom_call.1} parent=39 // pred_check_branch
          %803 = sbr.rel (%p801) target = $region56
        $region55: #{tpu_custom_call.1} parent=39 // pred_region
          %s805 = ssub.s32 128, 128
          %806 = vsyncadd %s797, %s805
          %s807 = smul.addr %s23, 128
          %s808 = scalar_lea.hbm %s5, %s807
          %s810 = sshll.u32 %s800, 4
          %s811 = int_to_ptr.vmem [resolvable:$true] %s810
          %813 = dma.vmem_to_hbm [thread:$0]  %s811, 128, %s808, %s797
        $region56: #{tpu_custom_call.1} parent=39 // pred_fallthru
          _
      $region40: #{tpu_custom_call.1} parent=5 // pred_fallthru
        _
      %p814 = scmp.le.s32.totalorder 2, %s18
      // Predicated region
      $region57: #{tpu_custom_call.1} parent=5 // pred_check
        %p815 = pneg %p814
      $region58: #{tpu_custom_call.1} parent=5 // pred_check_branch
        %817 = sbr.rel (%p815) target = $region60
      $region59: #{tpu_custom_call.1} parent=5 // pred_region
        %s818 = ssub.s32 %s18, 2
        // Predicated region
        $region61: #{tpu_custom_call.1} parent=59 // pred_check
          %p819 = pneg %p157
        $region62: #{tpu_custom_call.1} parent=59 // pred_check_branch
          %821 = sbr.rel (%p819) target = $region64
        $region63: #{tpu_custom_call.1} parent=59 // pred_region
          %s822 = sand.u32 %s142, 1
          %s823 = scalar_lea.sflag [#allocation4], %s822
          %s824 = sand.u32 %s142, 1
          %s825 = smul.addr %s824, 8
          %s826 = scalar_lea.vmem [#allocation8], %s825
          %827 = dma.done %s823, 128
        $region64: #{tpu_custom_call.1} parent=59 // pred_fallthru
          _
      $region60: #{tpu_custom_call.1} parent=5 // pred_fallthru
        _
    $region6: #{tpu_custom_call.1} parent=1 // loop_footer
      %s22 = sadd.s32 1, %s18
    $region7: #{tpu_custom_call.1} parent=1 // loop_footer_branch
      %17 = sbr.rel target = $region3
    $region8: #{tpu_custom_call.1} parent=1 // loop_exit
      _
    %828 = vsyncpa [#allocation3], 1
    %s829 = scalar_lea.sflag [#allocation3], 1
    %830 = vsyncpa %s829, 1
    %831 = vsyncpa [#allocation6], 1
    %832 = vsyncpa [#allocation4], 1
    %s833 = scalar_lea.sflag [#allocation4], 1
    %834 = vsyncpa %s833, 1

// kernel: tpu_custom_call.1
$region0: #{tpu_custom_call.1}
  #allocation0 [shape = 'u32[]', space=smem, size = 0x4, offset = 0x4, fixed_abs, tag = 'smem constant byte address 0x4 - core index']
  #allocation1 [shape = 'u32[144,128]{1,0:T(1,128)}', space=vmem, size = 0x12000, scoped, tag = 'internal scratch']
  %s0 = inlined_call_operand.hbm [shape: f32[16,8,128], index: 0, kind: input, shape index: {}]
  %s1 = inlined_call_operand.hbm [shape: f32[128,128], index: 1, kind: input, shape index: {}]
  %s2 = inlined_call_operand.vmem [shape: f32[1,128], index: 2, kind: input, shape index: {}]
  %s3 = inlined_call_operand.hbm [shape: f32[128,128], index: 3, kind: input, shape index: {}]
  %s4 = inlined_call_operand.vmem [shape: f32[1,128], index: 4, kind: input, shape index: {}]
  %s5 = inlined_call_operand.hbm [shape: f32[16,128], index: 5, kind: output, shape index: {}]
  %s6 = sld [smem:[#allocation0]]
  $region65: #{tpu_custom_call.1} parent=0
    _
  %s8 = ssub.s32 1, %s6
  %s9 = scalar_select 0, %s8, %s6
  $region1: #{tpu_custom_call.1} parent=0
    #allocation2 [shape = 'u8[65536]{0}', space=vmem, size = 0x10000, scoped, tag = 'input window, operand 0']
    #allocation3 [shape = 's32[2]{0}', space=sflag, size = 0x8, scoped, tag = 'scoped memory for tpu_custom_call.1']
    #allocation4 [shape = 's32[2]{0}', space=sflag, size = 0x8, scoped, tag = 'scoped memory for tpu_custom_call.1']
    #allocation5 [shape = 'u8[65536]{0}', space=vmem, size = 0x10000, scoped, tag = 'input window, operand 1, single buffered']
    #allocation6 [shape = 's32[1]{0}', space=sflag, size = 0x4, scoped, tag = 'scoped memory for tpu_custom_call.1']
    #allocation7 [shape = 'u8[65536]{0}', space=vmem, size = 0x10000, scoped, tag = 'input window, operand 3, single buffered']
    #allocation8 [shape = 'u8[8192]{0}', space=vmem, size = 0x2000, scoped, tag = 'output window, operand 0']
    %10 = vsyncpa [#allocation3], 0
    %s11 = scalar_lea.sflag [#allocation3], 1
    %12 = vsyncpa %s11, 0
    %13 = vsyncpa [#allocation6], 0
    %14 = vsyncpa [#allocation4], 0
    %s15 = scalar_lea.sflag [#allocation4], 1
    %16 = vsyncpa %s15, 0
    loop: start=0, step=1, limit=4
    $region2: #{tpu_custom_call.1} parent=1 // loop_pre_header
      _
    $region3: #{tpu_custom_call.1} parent=1 // loop_header
      %s18 = sphi 0, %s22
      %p19 = scmp.ge.s32.totalorder %s18, 4
      %s28 = sphi 0, %s30
      %s31 = sphi 0, %s28
      %s32 = sphi 0, %s31
      %s48 = sphi 0, %s32
      %s52 = sphi 0, %s52
      %s54 = sphi 0, %s52
      %s55 = sphi 0, %s54
      %s69 = sphi 0, %s55
      %s73 = sphi 0, %s73
      %s75 = sphi 0, %s73
      %s76 = sphi 0, %s75
      %s90 = sphi 0, %s76
      %s94 = sphi 0, %s94
      %s96 = sphi 0, %s94
      %s97 = sphi 0, %s96
      %s111 = sphi 0, %s97
      %s115 = sphi 0, %s115
      %s117 = sphi 0, %s115
      %s118 = sphi 0, %s117
      %s132 = sphi 0, %s118
      %s138 = sphi 0, %s140
      %s141 = sphi 0, %s138
      %s142 = sphi 0, %s141
      %s158 = sphi 0, %s142
    $region4: #{tpu_custom_call.1} parent=1 // loop_header_branch
      %21 = sbr.rel (%p19) target = $region8
    $region5: #{tpu_custom_call.1} parent=1 // loop_body
      %s23 = ssub.s32 %s18, 1
      %s24 = ssub.s32 %s18, 2
      %s25 = sadd.s32 %s18, 1
      %s26 = ssub.s32 %s18, %s25
      %p27 = scmp.eq.s32.totalorder %s26, 0
      %s29 = sadd.s32 %s28, 1
      %s30 = scalar_select %p27, %s28, %s29
      %p33 = pneg %p27
      %p34 = scmp.eq.s32.totalorder %s18, 1
      %p35 = por %p33, %p34
      %p36 = scmp.ne.s32.totalorder %s28, %s31
      %p37 = scmp.eq.s32.totalorder %s18, 0
      %p38 = por %p36, %p37
      %p39 = scmp.ne.s32.totalorder %s28, %s31
      %p40 = scmp.eq.s32.totalorder %s23, 1
      %p41 = por %p39, %p40
      %p42 = scmp.ne.s32.totalorder %s31, %s32
      %p43 = scmp.eq.s32.totalorder %s23, 0
      %p44 = por %p42, %p43
      %p45 = scmp.ne.s32.totalorder %s31, %s32
      %p46 = scmp.eq.s32.totalorder %s24, 1
      %p47 = por %p45, %p46
      %p49 = scmp.ne.s32.totalorder %s32, %s48
      %p50 = scmp.eq.s32.totalorder %s24, 0
      %p51 = por %p49, %p50
      %s53 = sadd.s32 %s52, 1
      %p56 = scmp.eq.s32.totalorder %s18, 1
      %p57 = scmp.ne.s32.totalorder %s52, %s54
      %p58 = scmp.eq.s32.totalorder %s18, 0
      %p59 = por %p57, %p58
      %p60 = scmp.ne.s32.totalorder %s52, %s54
      %p61 = scmp.eq.s32.totalorder %s23, 1
      %p62 = por %p60, %p61
      %p63 = scmp.ne.s32.totalorder %s54, %s55
      %p64 = scmp.eq.s32.totalorder %s23, 0
      %p65 = por %p63, %p64
      %p66 = scmp.ne.s32.totalorder %s54, %s55
      %p67 = scmp.eq.s32.totalorder %s24, 1
      %p68 = por %p66, %p67
      %p70 = scmp.ne.s32.totalorder %s55, %s69
      %p71 = scmp.eq.s32.totalorder %s24, 0
      %p72 = por %p70, %p71
      %s74 = sadd.s32 %s73, 1
      %p77 = scmp.eq.s32.totalorder %s18, 1
      %p78 = scmp.ne.s32.totalorder %s73, %s75
      %p79 = scmp.eq.s32.totalorder %s18, 0
      %p80 = por %p78, %p79
      %p81 = scmp.ne.s32.totalorder %s73, %s75
      %p82 = scmp.eq.s32.totalorder %s23, 1
      %p83 = por %p81, %p82
      %p84 = scmp.ne.s32.totalorder %s75, %s76
      %p85 = scmp.eq.s32.totalorder %s23, 0
      %p86 = por %p84, %p85
      %p87 = scmp.ne.s32.totalorder %s75, %s76
      %p88 = scmp.eq.s32.totalorder %s24, 1
      %p89 = por %p87, %p88
      %p91 = scmp.ne.s32.totalorder %s76, %s90
      %p92 = scmp.eq.s32.totalorder %s24, 0
      %p93 = por %p91, %p92
      %s95 = sadd.s32 %s94, 1
      %p98 = scmp.eq.s32.totalorder %s18, 1
      %p99 = scmp.ne.s32.totalorder %s94, %s96
      %p100 = scmp.eq.s32.totalorder %s18, 0
      %p101 = por %p99, %p100
      %p102 = scmp.ne.s32.totalorder %s94, %s96
      %p103 = scmp.eq.s32.totalorder %s23, 1
      %p104 = por %p102, %p103
      %p105 = scmp.ne.s32.totalorder %s96, %s97
      %p106 = scmp.eq.s32.totalorder %s23, 0
      %p107 = por %p105, %p106
      %p108 = scmp.ne.s32.totalorder %s96, %s97
      %p109 = scmp.eq.s32.totalorder %s24, 1
      %p110 = por %p108, %p109
      %p112 = scmp.ne.s32.totalorder %s97, %s111
      %p113 = scmp.eq.s32.totalorder %s24, 0
      %p114 = por %p112, %p113
      %s116 = sadd.s32 %s115, 1
      %p119 = scmp.eq.s32.totalorder %s18, 1
      %p120 = scmp.ne.s32.totalorder %s115, %s117
      %p121 = scmp.eq.s32.totalorder %s18, 0
      %p122 = por %p120, %p121
      %p123 = scmp.ne.s32.totalorder %s115, %s117
      %p124 = scmp.eq.s32.totalorder %s23, 1
      %p125 = por %p123, %p124
      %p126 = scmp.ne.s32.totalorder %s117, %s118
      %p127 = scmp.eq.s32.totalorder %s23, 0
      %p128 = por %p126, %p127
      %p129 = scmp.ne.s32.totalorder %s117, %s118
      %p130 = scmp.eq.s32.totalorder %s24, 1
      %p131 = por %p129, %p130
      %p133 = scmp.ne.s32.totalorder %s118, %s132
      %p134 = scmp.eq.s32.totalorder %s24, 0
      %p135 = por %p133, %p134
      %s136 = ssub.s32 %s18, %s25
      %p137 = scmp.eq.s32.totalorder %s136, 0
      %s139 = sadd.s32 %s138, 1
      %s140 = scalar_select %p137, %s138, %s139
      %p143 = pneg %p137
      %p144 = scmp.eq.s32.totalorder %s18, 1
      %p145 = por %p143, %p144
      %p146 = scmp.ne.s32.totalorder %s138, %s141
      %p147 = scmp.eq.s32.totalorder %s18, 0
      %p148 = por %p146, %p147
      %p149 = scmp.ne.s32.totalorder %s138, %s141
      %p150 = scmp.eq.s32.totalorder %s23, 1
      %p151 = por %p149, %p150
      %p152 = scmp.ne.s32.totalorder %s141, %s142
      %p153 = scmp.eq.s32.totalorder %s23, 0
      %p154 = por %p152, %p153
      %p155 = scmp.ne.s32.totalorder %s141, %s142
      %p156 = scmp.eq.s32.totalorder %s24, 1
      %p157 = por %p155, %p156
      %p159 = scmp.ne.s32.totalorder %s142, %s158
      %p160 = scmp.eq.s32.totalorder %s24, 0
      %p161 = por %p159, %p160
      %p162 = scmp.le.s32.totalorder 1, %s18
      %p163 = scmp.lt.s32.totalorder %s18, 3
      %p164 = pnand %p162, %p163
      %p165 = pneg %p164
      // Predicated region
      $region9: #{tpu_custom_call.1} parent=5 // pred_check
        _
      $region10: #{tpu_custom_call.1} parent=5 // pred_check_branch
        %167 = sbr.rel (%p164) target = $region12
      $region11: #{tpu_custom_call.1} parent=5 // pred_region
        %s168 = ssub.s32 %s18, 1
        // Predicated region
        $region13: #{tpu_custom_call.1} parent=11 // pred_check
          %p169 = pneg %p65
        $region14: #{tpu_custom_call.1} parent=11 // pred_check_branch
          %171 = sbr.rel (%p169) target = $region16
        $region15: #{tpu_custom_call.1} parent=11 // pred_region
          %s173 = ssub.s32 2048, 2048
          %174 = vsyncadd [#allocation6], %s173
          %s175 = sshll.u32 [#allocation5], 4
          %s176 = int_to_ptr.vmem [resolvable:$true] %s175
          %181 = dma.hbm_to_vmem [thread:$0]  %s1, 2048, %s176, [#allocation6], 128, 128, 8
        $region16: #{tpu_custom_call.1} parent=11 // pred_fallthru
          _
        // Predicated region
        $region17: #{tpu_custom_call.1} parent=11 // pred_check
          %p182 = pneg %p86
        $region18: #{tpu_custom_call.1} parent=11 // pred_check_branch
          %184 = sbr.rel (%p182) target = $region20
        $region19: #{tpu_custom_call.1} parent=11 // pred_region
          _
        $region20: #{tpu_custom_call.1} parent=11 // pred_fallthru
          _
        // Predicated region
        $region21: #{tpu_custom_call.1} parent=11 // pred_check
          %p185 = pneg %p107
        $region22: #{tpu_custom_call.1} parent=11 // pred_check_branch
          %187 = sbr.rel (%p185) target = $region24
        $region23: #{tpu_custom_call.1} parent=11 // pred_region
          %s189 = ssub.s32 2048, 2048
          %190 = vsyncadd [#allocation6], %s189
          %s191 = sshll.u32 [#allocation7], 4
          %s192 = int_to_ptr.vmem [resolvable:$true] %s191
          %197 = dma.hbm_to_vmem [thread:$0]  %s3, 2048, %s192, [#allocation6], 128, 128, 8
        $region24: #{tpu_custom_call.1} parent=11 // pred_fallthru
          _
        // Predicated region
        $region25: #{tpu_custom_call.1} parent=11 // pred_check
          %p198 = pneg %p128
        $region26: #{tpu_custom_call.1} parent=11 // pred_check_branch
          %200 = sbr.rel (%p198) target = $region28
        $region27: #{tpu_custom_call.1} parent=11 // pred_region
          _
        $region28: #{tpu_custom_call.1} parent=11 // pred_fallthru
          _
      $region12: #{tpu_custom_call.1} parent=5 // pred_fallthru
        _
      %p201 = scmp.lt.s32.totalorder %s18, 2
      // Predicated region
      $region29: #{tpu_custom_call.1} parent=5 // pred_check
        %p202 = pneg %p201
      $region30: #{tpu_custom_call.1} parent=5 // pred_check_branch
        %204 = sbr.rel (%p202) target = $region32
      $region31: #{tpu_custom_call.1} parent=5 // pred_region
        // Predicated region
        $region33: #{tpu_custom_call.1} parent=31 // pred_check
          %p205 = pneg %p38
        $region34: #{tpu_custom_call.1} parent=31 // pred_check_branch
          %207 = sbr.rel (%p205) target = $region36
        $region35: #{tpu_custom_call.1} parent=31 // pred_region
          %s208 = sand.u32 %s28, 1
          %s209 = scalar_lea.sflag [#allocation3], %s208
          %s210 = sand.u32 %s28, 1
          %s211 = smul.addr %s210, 64
          %s212 = scalar_lea.vmem [#allocation2], %s211
          %s213 = smul.u32 8, %s18
          %s215 = ssub.s32 1024, 1024
          %216 = vsyncadd %s209, %s215
          %s217 = smul.addr %s213, 128
          %s218 = scalar_lea.hbm %s0, %s217
          %s219 = sshll.u32 %s212, 4
          %s220 = int_to_ptr.vmem [resolvable:$true] %s219
          %225 = dma.hbm_to_vmem [thread:$0]  %s218, 1024, %s220, %s209, 128, 128, 8
        $region36: #{tpu_custom_call.1} parent=31 // pred_fallthru
          _
      $region32: #{tpu_custom_call.1} parent=5 // pred_fallthru
        _
      %p226 = scmp.le.s32.totalorder 1, %s18
      %p227 = scmp.lt.s32.totalorder %s18, 3
      %p228 = pnand %p226, %p227
      %p229 = pneg %p228
      // Predicated region
      $region37: #{tpu_custom_call.1} parent=5 // pred_check
        _
      $region38: #{tpu_custom_call.1} parent=5 // pred_check_branch
        %231 = sbr.rel (%p228) target = $region40
      $region39: #{tpu_custom_call.1} parent=5 // pred_region
        %s232 = ssub.s32 %s18, 1
        %s233 = sand.u32 %s31, 1
        %s234 = scalar_lea.sflag [#allocation3], %s233
        %s235 = sand.u32 %s31, 1
        %s236 = smul.addr %s235, 64
        %s237 = scalar_lea.vmem [#allocation2], %s236
        // Predicated region
        $region41: #{tpu_custom_call.1} parent=39 // pred_check
          %p238 = pneg %p44
        $region42: #{tpu_custom_call.1} parent=39 // pred_check_branch
          %240 = sbr.rel (%p238) target = $region44
        $region43: #{tpu_custom_call.1} parent=39 // pred_region
          %241 = dma.done %s234, 1024
        $region44: #{tpu_custom_call.1} parent=39 // pred_fallthru
          _
        // Predicated region
        $region45: #{tpu_custom_call.1} parent=39 // pred_check
          %p242 = pneg %p65
        $region46: #{tpu_custom_call.1} parent=39 // pred_check_branch
          %244 = sbr.rel (%p242) target = $region48
        $region47: #{tpu_custom_call.1} parent=39 // pred_region
          %245 = dma.done [#allocation6], 2048
        $region48: #{tpu_custom_call.1} parent=39 // pred_fallthru
          _
        // Predicated region
        $region49: #{tpu_custom_call.1} parent=39 // pred_check
          %p246 = pneg %p107
        $region50: #{tpu_custom_call.1} parent=39 // pred_check_branch
          %248 = sbr.rel (%p246) target = $region52
        $region51: #{tpu_custom_call.1} parent=39 // pred_region
          %249 = dma.done [#allocation6], 2048
        $region52: #{tpu_custom_call.1} parent=39 // pred_fallthru
          _
        %s250 = sand.u32 %s31, 1
        %s251 = scalar_lea.sflag [#allocation3], %s250
        %s252 = sand.u32 %s31, 1
        %s253 = smul.addr %s252, 64
        %s254 = scalar_lea.vmem [#allocation2], %s253
        %p255 = pneg %p44
        %p256 = pneg %p41
        %p257 = pneg %p65
        %p258 = pneg %p62
        %p259 = pneg %p86
        %p260 = pneg %p83
        %p261 = pneg %p107
        %p262 = pneg %p104
        %p263 = pneg %p128
        %p264 = pneg %p125
        %p265 = pneg %p154
        %p266 = pneg %p151
        %s267 = sand.u32 %s141, 1
        %s268 = scalar_lea.sflag [#allocation4], %s267
        %s269 = sand.u32 %s141, 1
        %s270 = smul.addr %s269, 8
        %s271 = scalar_lea.vmem [#allocation8], %s270
        %s272 = smul.u32 8, %s23
        %v273 = vld [vmem:[%s237] sm:$0xff]
        %v274 = vld [vmem:[%s237 + $0x8] sm:$0xff]
        %v275 = vld [vmem:[%s237 + $0x10] sm:$0xff]
        %v276 = vld [vmem:[%s237 + $0x18] sm:$0xff]
        %v277 = vld [vmem:[%s237 + $0x20] sm:$0xff]
        %v278 = vld [vmem:[%s237 + $0x28] sm:$0xff]
        %v279 = vld [vmem:[%s237 + $0x30] sm:$0xff]
        %v280 = vld [vmem:[%s237 + $0x38] sm:$0xff]
        %v281 = vld [vmem:[#allocation5] sm:$0xff]
        %v282 = vld [vmem:[#allocation5 + $0x8] sm:$0xff]
        %v283 = vld [vmem:[#allocation5 + $0x10] sm:$0xff]
        %v284 = vld [vmem:[#allocation5 + $0x18] sm:$0xff]
        %v285 = vld [vmem:[#allocation5 + $0x20] sm:$0xff]
        %v286 = vld [vmem:[#allocation5 + $0x28] sm:$0xff]
        %v287 = vld [vmem:[#allocation5 + $0x30] sm:$0xff]
        %v288 = vld [vmem:[#allocation5 + $0x38] sm:$0xff]
        %v289 = vld [vmem:[#allocation5 + $0x40] sm:$0xff]
        %v290 = vld [vmem:[#allocation5 + $0x48] sm:$0xff]
        %v291 = vld [vmem:[#allocation5 + $0x50] sm:$0xff]
        %v292 = vld [vmem:[#allocation5 + $0x58] sm:$0xff]
        %v293 = vld [vmem:[#allocation5 + $0x60] sm:$0xff]
        %v294 = vld [vmem:[#allocation5 + $0x68] sm:$0xff]
        %v295 = vld [vmem:[#allocation5 + $0x70] sm:$0xff]
        %v296 = vld [vmem:[#allocation5 + $0x78] sm:$0xff]
        %v297 = vld [vmem:[%s2] sm:$0x1]
        %v299 = vlaneseq
        %v300 = vshrl.u32 %v299, 7
        %v301 = vsub.s32 0, %v300
        %v302 = vrot.slane %v297, %v301
        %304 = vmatprep.subr.mxu0 0.0
        %305 = vmatpush1.msra.mxu0 %v296
        %306 = vmatprep.subr.mxu0 0.0
        %307 = vmatpush1.msra.mxu0 %v295
        %308 = vmatprep.subr.mxu0 0.0
        %309 = vmatpush1.msra.mxu0 %v294
        %310 = vmatprep.subr.mxu0 0.0
        %311 = vmatpush1.msra.mxu0 %v293
        %312 = vmatprep.subr.mxu0 0.0
        %313 = vmatpush1.msra.mxu0 %v292
        %314 = vmatprep.subr.mxu0 0.0
        %315 = vmatpush1.msra.mxu0 %v291
        %316 = vmatprep.subr.mxu0 0.0
        %317 = vmatpush1.msra.mxu0 %v290
        %318 = vmatprep.subr.mxu0 0.0
        %319 = vmatpush1.msra.mxu0 %v289
        %320 = vmatprep.subr.mxu0 0.0
        %321 = vmatpush1.msra.mxu0 %v288
        %322 = vmatprep.subr.mxu0 0.0
        %323 = vmatpush1.msra.mxu0 %v287
        %324 = vmatprep.subr.mxu0 0.0
        %325 = vmatpush1.msra.mxu0 %v286
        %326 = vmatprep.subr.mxu0 0.0
        %327 = vmatpush1.msra.mxu0 %v285
        %328 = vmatprep.subr.mxu0 0.0
        %329 = vmatpush1.msra.mxu0 %v284
        %330 = vmatprep.subr.mxu0 0.0
        %331 = vmatpush1.msra.mxu0 %v283
        %332 = vmatprep.subr.mxu0 0.0
        %333 = vmatpush1.msra.mxu0 %v282
        %334 = vmatprep.subr.mxu0 0.0
        %335 = vmatpush1.msra.mxu0 %v281
        %336 = vmatprep.subr.mxu0 0.0
        %337 = vmatpush2.msra.mxu0 0.0
        %338 = vmatprep.subr.mxu0 0.0
        %339 = vmatpush2.msra.mxu0 0.0
        %340 = vmatprep.subr.mxu0 0.0
        %341 = vmatpush2.msra.mxu0 0.0
        %342 = vmatprep.subr.mxu0 0.0
        %343 = vmatpush2.msra.mxu0 0.0
        %344 = vmatprep.subr.mxu0 0.0
        %345 = vmatpush2.msra.mxu0 0.0
        %346 = vmatprep.subr.mxu0 0.0
        %347 = vmatpush2.msra.mxu0 0.0
        %348 = vmatprep.subr.mxu0 0.0
        %349 = vmatpush2.msra.mxu0 0.0
        %350 = vmatprep.subr.mxu0 0.0
        %351 = vmatpush2.msra.mxu0 0.0
        %352 = vmatprep.subr.mxu0 0.0
        %353 = vmatpush2.msra.mxu0 0.0
        %354 = vmatprep.subr.mxu0 0.0
        %355 = vmatpush2.msra.mxu0 0.0
        %356 = vmatprep.subr.mxu0 0.0
        %357 = vmatpush2.msra.mxu0 0.0
        %358 = vmatprep.subr.mxu0 0.0
        %359 = vmatpush2.msra.mxu0 0.0
        %360 = vmatprep.subr.mxu0 0.0
        %361 = vmatpush2.msra.mxu0 0.0
        %362 = vmatprep.subr.mxu0 0.0
        %363 = vmatpush2.msra.mxu0 0.0
        %364 = vmatprep.subr.mxu0 0.0
        %365 = vmatpush2.msra.mxu0 0.0
        %366 = vmatprep.subr.mxu0 0.0
        %367 = vmatpush2.msra.mxu0 0.0
        %368 = vmatprep.mubr.f32.mxu0 0.0
        %369 = vmatmul.mubr.f32.gmra.mxu0 %v273
        %v370 = vpop.f32.mrf.mxu0
        %v371 = vadd.f32 %v302, %v370
        %v372 = vpop.f32.mrf.mxu0
        %373 = vmatprep.mubr.f32.mxu0 0.0
        %374 = vmatmul.mubr.f32.gmra.mxu0 %v274
        %v375 = vpop.f32.mrf.mxu0
        %v376 = vadd.f32 %v302, %v375
        %v377 = vpop.f32.mrf.mxu0
        %378 = vmatprep.mubr.f32.mxu0 0.0
        %379 = vmatmul.mubr.f32.gmra.mxu0 %v275
        %v380 = vpop.f32.mrf.mxu0
        %v381 = vadd.f32 %v302, %v380
        %v382 = vpop.f32.mrf.mxu0
        %383 = vmatprep.mubr.f32.mxu0 0.0
        %384 = vmatmul.mubr.f32.gmra.mxu0 %v276
        %v385 = vpop.f32.mrf.mxu0
        %v386 = vadd.f32 %v302, %v385
        %v387 = vpop.f32.mrf.mxu0
        %388 = vmatprep.mubr.f32.mxu0 0.0
        %389 = vmatmul.mubr.f32.gmra.mxu0 %v277
        %v390 = vpop.f32.mrf.mxu0
        %v391 = vadd.f32 %v302, %v390
        %v392 = vpop.f32.mrf.mxu0
        %393 = vmatprep.mubr.f32.mxu0 0.0
        %394 = vmatmul.mubr.f32.gmra.mxu0 %v278
        %v395 = vpop.f32.mrf.mxu0
        %v396 = vadd.f32 %v302, %v395
        %v397 = vpop.f32.mrf.mxu0
        %398 = vmatprep.mubr.f32.mxu0 0.0
        %399 = vmatmul.mubr.f32.gmra.mxu0 %v279
        %v400 = vpop.f32.mrf.mxu0
        %v401 = vadd.f32 %v302, %v400
        %v402 = vpop.f32.mrf.mxu0
        %403 = vmatprep.mubr.f32.mxu0 0.0
        %404 = vmatmul.mubr.f32.gmra.mxu0 %v280
        %v405 = vpop.f32.mrf.mxu0
        %v406 = vadd.f32 %v302, %v405
        %v407 = vpop.f32.mrf.mxu0
        %408 = vdwg.mxu0
        %v409 = vmax.f32 %v371, 0.0
        %v410 = vmax.f32 %v376, 0.0
        %v411 = vmax.f32 %v381, 0.0
        %v412 = vmax.f32 %v386, 0.0
        %v413 = vmax.f32 %v391, 0.0
        %v414 = vmax.f32 %v396, 0.0
        %v415 = vmax.f32 %v401, 0.0
        %v416 = vmax.f32 %v406, 0.0
        %v417 = vld [vmem:[#allocation7] sm:$0xff]
        %v418 = vld [vmem:[#allocation7 + $0x8] sm:$0xff]
        %v419 = vld [vmem:[#allocation7 + $0x10] sm:$0xff]
        %v420 = vld [vmem:[#allocation7 + $0x18] sm:$0xff]
        %v421 = vld [vmem:[#allocation7 + $0x20] sm:$0xff]
        %v422 = vld [vmem:[#allocation7 + $0x28] sm:$0xff]
        %v423 = vld [vmem:[#allocation7 + $0x30] sm:$0xff]
        %v424 = vld [vmem:[#allocation7 + $0x38] sm:$0xff]
        %v425 = vld [vmem:[#allocation7 + $0x40] sm:$0xff]
        %v426 = vld [vmem:[#allocation7 + $0x48] sm:$0xff]
        %v427 = vld [vmem:[#allocation7 + $0x50] sm:$0xff]
        %v428 = vld [vmem:[#allocation7 + $0x58] sm:$0xff]
        %v429 = vld [vmem:[#allocation7 + $0x60] sm:$0xff]
        %v430 = vld [vmem:[#allocation7 + $0x68] sm:$0xff]
        %v431 = vld [vmem:[#allocation7 + $0x70] sm:$0xff]
        %v432 = vld [vmem:[#allocation7 + $0x78] sm:$0xff]
        %v433 = vld [vmem:[%s4] sm:$0x1]
        %v435 = vlaneseq
        %v436 = vshrl.u32 %v435, 7
        %v437 = vsub.s32 0, %v436
        %v438 = vrot.slane %v433, %v437
        %440 = vmatprep.subr.mxu0 0.0
        %441 = vmatpush1.msra.mxu0 %v432
        %442 = vmatprep.subr.mxu0 0.0
        %443 = vmatpush1.msra.mxu0 %v431
        %444 = vmatprep.subr.mxu0 0.0
        %445 = vmatpush1.msra.mxu0 %v430
        %446 = vmatprep.subr.mxu0 0.0
        %447 = vmatpush1.msra.mxu0 %v429
        %448 = vmatprep.subr.mxu0 0.0
        %449 = vmatpush1.msra.mxu0 %v428
        %450 = vmatprep.subr.mxu0 0.0
        %451 = vmatpush1.msra.mxu0 %v427
        %452 = vmatprep.subr.mxu0 0.0
        %453 = vmatpush1.msra.mxu0 %v426
        %454 = vmatprep.subr.mxu0 0.0
        %455 = vmatpush1.msra.mxu0 %v425
        %456 = vmatprep.subr.mxu0 0.0
        %457 = vmatpush1.msra.mxu0 %v424
        %458 = vmatprep.subr.mxu0 0.0
        %459 = vmatpush1.msra.mxu0 %v423
        %460 = vmatprep.subr.mxu0 0.0
        %461 = vmatpush1.msra.mxu0 %v422
        %462 = vmatprep.subr.mxu0 0.0
        %463 = vmatpush1.msra.mxu0 %v421
        %464 = vmatprep.subr.mxu0 0.0
        %465 = vmatpush1.msra.mxu0 %v420
        %466 = vmatprep.subr.mxu0 0.0
        %467 = vmatpush1.msra.mxu0 %v419
        %468 = vmatprep.subr.mxu0 0.0
        %469 = vmatpush1.msra.mxu0 %v418
        %470 = vmatprep.subr.mxu0 0.0
        %471 = vmatpush1.msra.mxu0 %v417
        %472 = vmatprep.subr.mxu0 0.0
        %473 = vmatpush2.msra.mxu0 0.0
        %474 = vmatprep.subr.mxu0 0.0
        %475 = vmatpush2.msra.mxu0 0.0
        %476 = vmatprep.subr.mxu0 0.0
        %477 = vmatpush2.msra.mxu0 0.0
        %478 = vmatprep.subr.mxu0 0.0
        %479 = vmatpush2.msra.mxu0 0.0
        %480 = vmatprep.subr.mxu0 0.0
        %481 = vmatpush2.msra.mxu0 0.0
        %482 = vmatprep.subr.mxu0 0.0
        %483 = vmatpush2.msra.mxu0 0.0
        %484 = vmatprep.subr.mxu0 0.0
        %485 = vmatpush2.msra.mxu0 0.0
        %486 = vmatprep.subr.mxu0 0.0
        %487 = vmatpush2.msra.mxu0 0.0
        %488 = vmatprep.subr.mxu0 0.0
        %489 = vmatpush2.msra.mxu0 0.0
        %490 = vmatprep.subr.mxu0 0.0
        %491 = vmatpush2.msra.mxu0 0.0
        %492 = vmatprep.subr.mxu0 0.0
        %493 = vmatpush2.msra.mxu0 0.0
        %494 = vmatprep.subr.mxu0 0.0
        %495 = vmatpush2.msra.mxu0 0.0
        %496 = vmatprep.subr.mxu0 0.0
        %497 = vmatpush2.msra.mxu0 0.0
        %498 = vmatprep.subr.mxu0 0.0
        %499 = vmatpush2.msra.mxu0 0.0
        %500 = vmatprep.subr.mxu0 0.0
        %501 = vmatpush2.msra.mxu0 0.0
        %502 = vmatprep.subr.mxu0 0.0
        %503 = vmatpush2.msra.mxu0 0.0
        %504 = vmatprep.mubr.f32.mxu0 0.0
        %505 = vmatmul.mubr.f32.gmra.mxu0 %v409
        %v506 = vpop.f32.mrf.mxu0
        %v507 = vadd.f32 %v438, %v506
        %v508 = vpop.f32.mrf.mxu0
        %509 = vmatprep.mubr.f32.mxu0 0.0
        %510 = vmatmul.mubr.f32.gmra.mxu0 %v410
        %v511 = vpop.f32.mrf.mxu0
        %v512 = vadd.f32 %v438, %v511
        %v513 = vpop.f32.mrf.mxu0
        %514 = vmatprep.mubr.f32.mxu0 0.0
        %515 = vmatmul.mubr.f32.gmra.mxu0 %v411
        %v516 = vpop.f32.mrf.mxu0
        %v517 = vadd.f32 %v438, %v516
        %v518 = vpop.f32.mrf.mxu0
        %519 = vmatprep.mubr.f32.mxu0 0.0
        %520 = vmatmul.mubr.f32.gmra.mxu0 %v412
        %v521 = vpop.f32.mrf.mxu0
        %v522 = vadd.f32 %v438, %v521
        %v523 = vpop.f32.mrf.mxu0
        %524 = vmatprep.mubr.f32.mxu0 0.0
        %525 = vmatmul.mubr.f32.gmra.mxu0 %v413
        %v526 = vpop.f32.mrf.mxu0
        %v527 = vadd.f32 %v438, %v526
        %v528 = vpop.f32.mrf.mxu0
        %529 = vmatprep.mubr.f32.mxu0 0.0
        %530 = vmatmul.mubr.f32.gmra.mxu0 %v414
        %v531 = vpop.f32.mrf.mxu0
        %v532 = vadd.f32 %v438, %v531
        %v533 = vpop.f32.mrf.mxu0
        %534 = vmatprep.mubr.f32.mxu0 0.0
        %535 = vmatmul.mubr.f32.gmra.mxu0 %v415
        %v536 = vpop.f32.mrf.mxu0
        %v537 = vadd.f32 %v438, %v536
        %v538 = vpop.f32.mrf.mxu0
        %539 = vmatprep.mubr.f32.mxu0 0.0
        %540 = vmatmul.mubr.f32.gmra.mxu0 %v416
        %v541 = vpop.f32.mrf.mxu0
        %v542 = vadd.f32 %v438, %v541
        %v543 = vpop.f32.mrf.mxu0
        %544 = vdwg.mxu0
        %v545 = vlaneseq
        %v546 = vshrl.u32 %v545, 7
        %vm547 = vcmp.lt.s32.totalorder %v546, 5
        %v548 = vsel %vm547, %v507, -1e+30
        %v549 = vsel %vm547, %v512, -1e+30
        %v550 = vsel %vm547, %v517, -1e+30
        %v551 = vsel %vm547, %v522, -1e+30
        %v552 = vsel %vm547, %v527, -1e+30
        %v553 = vsel %vm547, %v532, -1e+30
        %v554 = vsel %vm547, %v537, -1e+30
        %v555 = vsel %vm547, %v542, -1e+30
        %v556 = vrot.slane %v548, 4
        %v557 = vmax.f32 %v548, %v556
        %v558 = vrot.slane %v557, 2
        %v559 = vmax.f32 %v557, %v558
        %v560 = vrot.slane %v559, 1
        %v561 = vmax.f32 %v559, %v560
        %v562 = vrot.slane %v549, 4
        %v563 = vmax.f32 %v549, %v562
        %v564 = vrot.slane %v563, 2
        %v565 = vmax.f32 %v563, %v564
        %v566 = vrot.slane %v565, 1
        %v567 = vmax.f32 %v565, %v566
        %v568 = vrot.slane %v550, 4
        %v569 = vmax.f32 %v550, %v568
        %v570 = vrot.slane %v569, 2
        %v571 = vmax.f32 %v569, %v570
        %v572 = vrot.slane %v571, 1
        %v573 = vmax.f32 %v571, %v572
        %v574 = vrot.slane %v551, 4
        %v575 = vmax.f32 %v551, %v574
        %v576 = vrot.slane %v575, 2
        %v577 = vmax.f32 %v575, %v576
        %v578 = vrot.slane %v577, 1
        %v579 = vmax.f32 %v577, %v578
        %v580 = vrot.slane %v552, 4
        %v581 = vmax.f32 %v552, %v580
        %v582 = vrot.slane %v581, 2
        %v583 = vmax.f32 %v581, %v582
        %v584 = vrot.slane %v583, 1
        %v585 = vmax.f32 %v583, %v584
        %v586 = vrot.slane %v553, 4
        %v587 = vmax.f32 %v553, %v586
        %v588 = vrot.slane %v587, 2
        %v589 = vmax.f32 %v587, %v588
        %v590 = vrot.slane %v589, 1
        %v591 = vmax.f32 %v589, %v590
        %v592 = vrot.slane %v554, 4
        %v593 = vmax.f32 %v554, %v592
        %v594 = vrot.slane %v593, 2
        %v595 = vmax.f32 %v593, %v594
        %v596 = vrot.slane %v595, 1
        %v597 = vmax.f32 %v595, %v596
        %v598 = vrot.slane %v555, 4
        %v599 = vmax.f32 %v555, %v598
        %v600 = vrot.slane %v599, 2
        %v601 = vmax.f32 %v599, %v600
        %v602 = vrot.slane %v601, 1
        %v603 = vmax.f32 %v601, %v602
        %v604 = vsub.f32 %v548, %v561
        %v605 = vsub.f32 %v549, %v567
        %v606 = vsub.f32 %v550, %v573
        %v607 = vsub.f32 %v551, %v579
        %v608 = vsub.f32 %v552, %v585
        %v609 = vsub.f32 %v553, %v591
        %v610 = vsub.f32 %v554, %v597
        %v611 = vsub.f32 %v555, %v603
        %v612 = vmul.f32 %v604, 1.442695
        %v613 = vpow.pop %v612
        %v614 = vmul.f32 %v605, 1.442695
        %v615 = vpow.pop %v614
        %v616 = vmul.f32 %v606, 1.442695
        %v617 = vpow.pop %v616
        %v618 = vmul.f32 %v607, 1.442695
        %v619 = vpow.pop %v618
        %v620 = vmul.f32 %v608, 1.442695
        %v621 = vpow.pop %v620
        %v622 = vmul.f32 %v609, 1.442695
        %v623 = vpow.pop %v622
        %v624 = vmul.f32 %v610, 1.442695
        %v625 = vpow.pop %v624
        %v626 = vmul.f32 %v611, 1.442695
        %v627 = vpow.pop %v626
        %v628 = vrot.slane %v613, 4
        %v629 = vadd.f32 %v613, %v628
        %v630 = vrot.slane %v629, 2
        %v631 = vadd.f32 %v629, %v630
        %v632 = vrot.slane %v631, 1
        %v633 = vadd.f32 %v631, %v632
        %v634 = vrot.slane %v615, 4
        %v635 = vadd.f32 %v615, %v634
        %v636 = vrot.slane %v635, 2
        %v637 = vadd.f32 %v635, %v636
        %v638 = vrot.slane %v637, 1
        %v639 = vadd.f32 %v637, %v638
        %v640 = vrot.slane %v617, 4
        %v641 = vadd.f32 %v617, %v640
        %v642 = vrot.slane %v641, 2
        %v643 = vadd.f32 %v641, %v642
        %v644 = vrot.slane %v643, 1
        %v645 = vadd.f32 %v643, %v644
        %v646 = vrot.slane %v619, 4
        %v647 = vadd.f32 %v619, %v646
        %v648 = vrot.slane %v647, 2
        %v649 = vadd.f32 %v647, %v648
        %v650 = vrot.slane %v649, 1
        %v651 = vadd.f32 %v649, %v650
        %v652 = vrot.slane %v621, 4
        %v653 = vadd.f32 %v621, %v652
        %v654 = vrot.slane %v653, 2
        %v655 = vadd.f32 %v653, %v654
        %v656 = vrot.slane %v655, 1
        %v657 = vadd.f32 %v655, %v656
        %v658 = vrot.slane %v623, 4
        %v659 = vadd.f32 %v623, %v658
        %v660 = vrot.slane %v659, 2
        %v661 = vadd.f32 %v659, %v660
        %v662 = vrot.slane %v661, 1
        %v663 = vadd.f32 %v661, %v662
        %v664 = vrot.slane %v625, 4
        %v665 = vadd.f32 %v625, %v664
        %v666 = vrot.slane %v665, 2
        %v667 = vadd.f32 %v665, %v666
        %v668 = vrot.slane %v667, 1
        %v669 = vadd.f32 %v667, %v668
        %v670 = vrot.slane %v627, 4
        %v671 = vadd.f32 %v627, %v670
        %v672 = vrot.slane %v671, 2
        %v673 = vadd.f32 %v671, %v672
        %v674 = vrot.slane %v673, 1
        %v675 = vadd.f32 %v673, %v674
        %v676 = vmul.f32 %v613, %v273
        %v677 = vmul.f32 %v615, %v274
        %v678 = vmul.f32 %v617, %v275
        %v679 = vmul.f32 %v619, %v276
        %v680 = vmul.f32 %v621, %v277
        %v681 = vmul.f32 %v623, %v278
        %v682 = vmul.f32 %v625, %v279
        %v683 = vmul.f32 %v627, %v280
        %v684 = vrot.slane %v676, 4
        %v685 = vadd.f32 %v676, %v684
        %v686 = vrot.slane %v685, 2
        %v687 = vadd.f32 %v685, %v686
        %v688 = vrot.slane %v687, 1
        %v689 = vadd.f32 %v687, %v688
        %v690 = vrot.slane %v677, 4
        %v691 = vadd.f32 %v677, %v690
        %v692 = vrot.slane %v691, 2
        %v693 = vadd.f32 %v691, %v692
        %v694 = vrot.slane %v693, 1
        %v695 = vadd.f32 %v693, %v694
        %v696 = vrot.slane %v678, 4
        %v697 = vadd.f32 %v678, %v696
        %v698 = vrot.slane %v697, 2
        %v699 = vadd.f32 %v697, %v698
        %v700 = vrot.slane %v699, 1
        %v701 = vadd.f32 %v699, %v700
        %v702 = vrot.slane %v679, 4
        %v703 = vadd.f32 %v679, %v702
        %v704 = vrot.slane %v703, 2
        %v705 = vadd.f32 %v703, %v704
        %v706 = vrot.slane %v705, 1
        %v707 = vadd.f32 %v705, %v706
        %v708 = vrot.slane %v680, 4
        %v709 = vadd.f32 %v680, %v708
        %v710 = vrot.slane %v709, 2
        %v711 = vadd.f32 %v709, %v710
        %v712 = vrot.slane %v711, 1
        %v713 = vadd.f32 %v711, %v712
        %v714 = vrot.slane %v681, 4
        %v715 = vadd.f32 %v681, %v714
        %v716 = vrot.slane %v715, 2
        %v717 = vadd.f32 %v715, %v716
        %v718 = vrot.slane %v717, 1
        %v719 = vadd.f32 %v717, %v718
        %v720 = vrot.slane %v682, 4
        %v721 = vadd.f32 %v682, %v720
        %v722 = vrot.slane %v721, 2
        %v723 = vadd.f32 %v721, %v722
        %v724 = vrot.slane %v723, 1
        %v725 = vadd.f32 %v723, %v724
        %v726 = vrot.slane %v683, 4
        %v727 = vadd.f32 %v683, %v726
        %v728 = vrot.slane %v727, 2
        %v729 = vadd.f32 %v727, %v728
        %v730 = vrot.slane %v729, 1
        %v731 = vadd.f32 %v729, %v730
        %v732 = vrcp.pop %v633
        %v733 = vrcp.pop %v639
        %v734 = vrcp.pop %v645
        %v735 = vrcp.pop %v651
        %v736 = vrcp.pop %v657
        %v737 = vrcp.pop %v663
        %v738 = vrcp.pop %v669
        %v739 = vrcp.pop %v675
        %v740 = vmul.f32 %v633, %v732
        %v741 = vmul.f32 %v639, %v733
        %v742 = vmul.f32 %v645, %v734
        %v743 = vmul.f32 %v651, %v735
        %v744 = vmul.f32 %v657, %v736
        %v745 = vmul.f32 %v663, %v737
        %v746 = vmul.f32 %v669, %v738
        %v747 = vmul.f32 %v675, %v739
        %v748 = vsub.f32 2.0, %v740
        %v749 = vsub.f32 2.0, %v741
        %v750 = vsub.f32 2.0, %v742
        %v751 = vsub.f32 2.0, %v743
        %v752 = vsub.f32 2.0, %v744
        %v753 = vsub.f32 2.0, %v745
        %v754 = vsub.f32 2.0, %v746
        %v755 = vsub.f32 2.0, %v747
        %v756 = vmul.f32 %v732, %v748
        %v757 = vmul.f32 %v733, %v749
        %v758 = vmul.f32 %v734, %v750
        %v759 = vmul.f32 %v735, %v751
        %v760 = vmul.f32 %v736, %v752
        %v761 = vmul.f32 %v737, %v753
        %v762 = vmul.f32 %v738, %v754
        %v763 = vmul.f32 %v739, %v755
        %v764 = vmul.f32 %v689, %v756
        %v765 = vmul.f32 %v695, %v757
        %v766 = vmul.f32 %v701, %v758
        %v767 = vmul.f32 %v707, %v759
        %v768 = vmul.f32 %v713, %v760
        %v769 = vmul.f32 %v719, %v761
        %v770 = vmul.f32 %v725, %v762
        %v771 = vmul.f32 %v731, %v763
        %vm780 = vcmask 1041409
        %v781 = vsel %vm780, %v765, %v764
        %vm782 = vcmask 1042434
        %v783 = vsel %vm782, %v766, %v781
        %vm784 = vcmask 1043459
        %v785 = vsel %vm784, %v767, %v783
        %vm786 = vcmask 1044484
        %v787 = vsel %vm786, %v768, %v785
        %vm788 = vcmask 1045509
        %v789 = vsel %vm788, %v769, %v787
        %vm790 = vcmask 1046534
        %v791 = vsel %vm790, %v770, %v789
        %vm792 = vcmask 1047559
        %v793 = vsel %vm792, %v771, %v791
        %795 = vst [vmem:[%s271] sm:$0xff] %v793
        %s796 = sand.u32 %s141, 1
        %s797 = scalar_lea.sflag [#allocation4], %s796
        %s798 = sand.u32 %s141, 1
        %s799 = smul.addr %s798, 8
        %s800 = scalar_lea.vmem [#allocation8], %s799
        // Predicated region
        $region53: #{tpu_custom_call.1} parent=39 // pred_check
          %p801 = pneg %p151
        $region54: #{tpu_custom_call.1} parent=39 // pred_check_branch
          %803 = sbr.rel (%p801) target = $region56
        $region55: #{tpu_custom_call.1} parent=39 // pred_region
          %s805 = ssub.s32 128, 128
          %806 = vsyncadd %s797, %s805
          %s807 = smul.addr %s23, 128
          %s808 = scalar_lea.hbm %s5, %s807
          %s810 = sshll.u32 %s800, 4
          %s811 = int_to_ptr.vmem [resolvable:$true] %s810
          %813 = dma.vmem_to_hbm [thread:$0]  %s811, 128, %s808, %s797
        $region56: #{tpu_custom_call.1} parent=39 // pred_fallthru
          _
      $region40: #{tpu_custom_call.1} parent=5 // pred_fallthru
        _
      %p814 = scmp.le.s32.totalorder 2, %s18
      // Predicated region
      $region57: #{tpu_custom_call.1} parent=5 // pred_check
        %p815 = pneg %p814
      $region58: #{tpu_custom_call.1} parent=5 // pred_check_branch
        %817 = sbr.rel (%p815) target = $region60
      $region59: #{tpu_custom_call.1} parent=5 // pred_region
        %s818 = ssub.s32 %s18, 2
        // Predicated region
        $region61: #{tpu_custom_call.1} parent=59 // pred_check
          %p819 = pneg %p157
        $region62: #{tpu_custom_call.1} parent=59 // pred_check_branch
          %821 = sbr.rel (%p819) target = $region64
        $region63: #{tpu_custom_call.1} parent=59 // pred_region
          %s822 = sand.u32 %s142, 1
          %s823 = scalar_lea.sflag [#allocation4], %s822
          %s824 = sand.u32 %s142, 1
          %s825 = smul.addr %s824, 8
          %s826 = scalar_lea.vmem [#allocation8], %s825
          %827 = dma.done %s823, 128
        $region64: #{tpu_custom_call.1} parent=59 // pred_fallthru
          _
      $region60: #{tpu_custom_call.1} parent=5 // pred_fallthru
        _
    $region6: #{tpu_custom_call.1} parent=1 // loop_footer
      %s22 = sadd.s32 1, %s18
    $region7: #{tpu_custom_call.1} parent=1 // loop_footer_branch
      %17 = sbr.rel target = $region3
    $region8: #{tpu_custom_call.1} parent=1 // loop_exit
      _
    %828 = vsyncpa [#allocation3], 1
    %s829 = scalar_lea.sflag [#allocation3], 1
    %830 = vsyncpa %s829, 1
    %831 = vsyncpa [#allocation6], 1
    %832 = vsyncpa [#allocation4], 1
    %s833 = scalar_lea.sflag [#allocation4], 1
    %834 = vsyncpa %s833, 1

</llo_original>
